<compile_context>
chip_gen: v7x
topology: tpu7x:2x2x1
jax: 0.10.0
libtpu: 0.0.40
codegen_flags: <defaults>
</compile_context>

<pallas_src>
import functools

import jax
import jax.numpy as jnp
from jax import lax
from jax.experimental import pallas as pl
from jax.experimental.pallas import tpu as pltpu


_VMEM = pl.BlockSpec(memory_space=pltpu.MemorySpace.VMEM)

# tanh(x) = 2*sigmoid(2x) - 1  ->  fold the x2 into the 'g' gate weights/bias.
_GSCALE = (1.0, 1.0, 2.0, 1.0)      # gate order i, f, g, o


# ------------------------------ fused Pallas kernel ------------------------------ #

def _bilstm_fused_kernel(*refs, seq_len, batch, hidden, num_layers):
    """Fused multi-layer bidirectional LSTM + final Linear (single call, no grid).

    refs layout:
      refs[0]                      x            [T, B, E]      (time-major, B padded to 8)
      refs[1+3l .. 3+3l]           layer l:     wih_stacked   [D_in, 8H]   (bf16)
                                                whh_blockdiag [2H,   8H]   (bf16)
                                                bias_stacked  [1,    8H]   (f32, summed)
      refs[1+3L], refs[2+3L]       fc:          W^T [2H, C] (bf16),  b [1, C] (f32)
      refs[3+3L]                   out          [B, C]
      refs[4+3L], refs[5+3L]       scratch:     hseq_f, hseq_b  [T, B, 2H]  (f32)

    Stacked gate layout (lanes): [i_f i_b | f_f f_b | g_f g_b | o_f o_b], each H wide.
    Hidden/cell state layout:    [h_fwd | h_bwd]  (2H lanes).
    """
    x_ref = refs[0]
    wfc_ref = refs[1 + 3 * num_layers]
    bfc_ref = refs[2 + 3 * num_layers]
    out_ref = refs[3 + 3 * num_layers]
    hseq_f = refs[4 + 3 * num_layers]       # hseq_f[t] = h(step t)        (time-forward)
    hseq_b = refs[5 + 3 * num_layers]       # hseq_b[t] = h(step T-1-t)    (time-reversed)

    T = seq_len
    B = batch
    H = hidden
    H2 = 2 * H            # fused (fwd|bwd) state width
    G = 4 * H2            # 8H stacked gate width

    lane_g = lax.broadcasted_iota(jnp.int32, (B, G), 1)
    is_fwd_lane = (lane_g % H2) < H                       # fwd half of every gate block
    is_g_lane = (lane_g >= 2 * H2) & (lane_g < 3 * H2)    # 'g' gate block
    is_lo_2h = lax.broadcasted_iota(jnp.int32, (B, H2), 1) < H

    def recurrence(gx_sel, whh_bf, write_seq):
        """gx_sel: list over steps of [B, 8H] (direction-selected, bias folded).
        Returns (h at step T-1, h at step 0)."""
        h = jnp.zeros((B, H2), jnp.float32)
        c = jnp.zeros((B, H2), jnp.float32)
        h_step0 = None
        for s in range(T):                              # static unroll (T is small)
            gates = jnp.dot(h.astype(jnp.bfloat16), whh_bf,
                            preferred_element_type=jnp.float32) + gx_sel[s]
            # Single full-tile EUP pass; g gate recovered via tanh(x) = 2*sig(2x) - 1
            # (x2 already folded into weights/bias).
            sig = jax.nn.sigmoid(gates)
            act = jnp.where(is_g_lane, 2.0 * sig - 1.0, sig)
            i_g = act[:, 0 * H2:1 * H2]
            f_g = act[:, 1 * H2:2 * H2]
            g_g = act[:, 2 * H2:3 * H2]
            o_g = act[:, 3 * H2:4 * H2]
            c = f_g * c + i_g * g_g
            h = o_g * jnp.tanh(c)
            if write_seq:
                # Aligned full-width stores, off the recurrent dependence chain.
                hseq_f[s] = h
                hseq_b[T - 1 - s] = h
            if s == 0:
                h_step0 = h
        return h, h_step0

    prev = x_ref[...].reshape(T * B, x_ref.shape[2]).astype(jnp.float32)   # [T*B, D_in]
    h_cat = None
    for layer in range(num_layers):
        wih = refs[1 + 3 * layer][...]          # bf16 [D_in, 8H]
        whh = refs[2 + 3 * layer][...]          # bf16 [2H, 8H]
        b = refs[3 + 3 * layer][...]            # f32  [1, 8H]
        # Hoisted input projection for the whole sequence (+ folded bias): one MXU pass.
        gx = jnp.dot(prev.astype(jnp.bfloat16), wih,
                     preferred_element_type=jnp.float32) + b               # [T*B, 8H]
        gx3 = gx.reshape(T, B, G)
        # Direction select hoisted off the recurrent chain (pre-loop, leading-axis views).
        gx_sel = [jnp.where(is_fwd_lane, gx3[s], gx3[T - 1 - s]) for s in range(T)]

        last = (layer + 1 == num_layers)
        h_fin, h0 = recurrence(gx_sel, whh, write_seq=not last)

        if not last:
            # prev[t] = [h_fwd(t) | h_bwd(t)] = fwd lanes from hseq_f[t], bwd from hseq_b[t].
            prev = jnp.where(is_lo_2h, hseq_f[...], hseq_b[...]).reshape(T * B, H2)
        else:
            # Classifier only consumes out[:, -1]; skip materializing the full output.
            h_cat = jnp.where(is_lo_2h, h_fin, h0)     # [h_fwd(T-1) | h_bwd(T-1)]

    out_ref[...] = (jnp.dot(h_cat.astype(jnp.bfloat16), wfc_ref[...],
                            preferred_element_type=jnp.float32)
                    + bfc_ref[...]).astype(out_ref.dtype)


# ------------------------------ parameter preparation ---------------------------- #

def init_params(key, *, vocab, emb_dim, hidden, num_layers, num_classes):
    """PyTorch-layout parameters (w_ih [4H, D_in], gate order i,f,g,o)."""
    keys = jax.random.split(key, 4 + num_layers)
    params = {}

    emb = jax.random.normal(keys[0], (vocab, emb_dim), jnp.float32)
    emb = emb.at[0].set(0.0)                                  # padding_idx=0
    params["embedding"] = emb

    bound = 1.0 / float(hidden) ** 0.5
    lstm_layers = []
    for layer in range(num_layers):
        d_in = emb_dim if layer == 0 else 2 * hidden
        kk = jax.random.split(keys[1 + layer], 8)
        u = lambda k, shape: jax.random.uniform(k, shape, jnp.float32,
                                                minval=-bound, maxval=bound)
        lstm_layers.append({
            "w_ih":   u(kk[0], (4 * hidden, d_in)),
            "w_hh":   u(kk[1], (4 * hidden, hidden)),
            "b_ih":   u(kk[2], (4 * hidden,)),
            "b_hh":   u(kk[3], (4 * hidden,)),
            "w_ih_r": u(kk[4], (4 * hidden, d_in)),
            "w_hh_r": u(kk[5], (4 * hidden, hidden)),
            "b_ih_r": u(kk[6], (4 * hidden,)),
            "b_hh_r": u(kk[7], (4 * hidden,)),
        })
    params["lstm"] = lstm_layers

    fb = 1.0 / float(2 * hidden) ** 0.5
    params["fc_w"] = jax.random.uniform(keys[-2], (num_classes, 2 * hidden),
                                        jnp.float32, minval=-fb, maxval=fb)
    params["fc_b"] = jax.random.uniform(keys[-1], (num_classes,),
                                        jnp.float32, minval=-fb, maxval=fb)
    return params


def prepare_fused_params(raw, *, hidden, num_layers):
    """Pre-transpose / stack weights once (gate-major, fwd|bwd per gate; bias summed;
    g-gate x2 folded for the tanh->sigmoid rewrite; MXU weights cast to bf16)."""
    H = hidden

    def stack_wih(wf, wb):                      # [4H, D_in] x2 -> [D_in, 8H]
        cols = []
        for k in range(4):
            cols.append(_GSCALE[k] * wf[k * H:(k + 1) * H, :].T)
            cols.append(_GSCALE[k] * wb[k * H:(k + 1) * H, :].T)
        return jnp.concatenate(cols, axis=1).astype(jnp.bfloat16)

    def stack_whh(wf, wb):                      # [4H, H] x2 -> block-diag [2H, 8H]
        z = jnp.zeros((H, H), jnp.float32)
        cols = []
        for k in range(4):
            cols.append(jnp.concatenate([_GSCALE[k] * wf[k * H:(k + 1) * H, :].T, z],
                                        axis=0))
            cols.append(jnp.concatenate([z, _GSCALE[k] * wb[k * H:(k + 1) * H, :].T],
                                        axis=0))
        return jnp.concatenate(cols, axis=1).astype(jnp.bfloat16)

    def stack_b(bf, bb):                        # pre-summed biases -> [1, 8H] (f32)
        parts = []
        for k in range(4):
            parts.append(_GSCALE[k] * bf[k * H:(k + 1) * H])
            parts.append(_GSCALE[k] * bb[k * H:(k + 1) * H])
        return jnp.concatenate(parts).reshape(1, -1).astype(jnp.float32)

    fused = {"embedding": raw["embedding"]}
    layers = []
    for layer in range(num_layers):
        p = raw["lstm"][layer]
        layers.append({
            "wih": stack_wih(p["w_ih"], p["w_ih_r"]),
            "whh": stack_whh(p["w_hh"], p["w_hh_r"]),
            "b":   stack_b(p["b_ih"] + p["b_hh"], p["b_ih_r"] + p["b_hh_r"]),
        })
    fused["lstm"] = layers
    fused["fc_wT"] = raw["fc_w"].T.astype(jnp.bfloat16)
    fused["fc_b"] = raw["fc_b"].reshape(1, -1).astype(jnp.float32)
    return fused


# ----------------------------------- forward ------------------------------------- #

def bilstm_forward(tokens, fused, *, num_layers, hidden):
    """embs = embedding(x); out,_ = lstm(embs); out = dropout(out); out = fc(out);
    return out[:, -1]  -- all LSTM layers + FC run in one Pallas call."""
    emb = jnp.take(fused["embedding"], tokens, axis=0)          # [B, T, E] (glue gather)
    B, T, E = emb.shape
    B_pad = max(8, ((B + 7) // 8) * 8)                          # f32 sublane tile
    x_tm = jnp.transpose(emb, (1, 0, 2))                        # [T, B, E]
    if B_pad != B:
        x_tm = jnp.pad(x_tm, ((0, 0), (0, B_pad - B), (0, 0)))  # [T, B_pad, E]

    num_classes = fused["fc_b"].shape[-1]
    kernel = functools.partial(_bilstm_fused_kernel, seq_len=T, batch=B_pad,
                               hidden=hidden, num_layers=num_layers)

    args = [x_tm.astype(jnp.float32)]
    for layer in range(num_layers):
        lp = fused["lstm"][layer]
        args += [lp["wih"], lp["whh"], lp["b"]]
    args += [fused["fc_wT"], fused["fc_b"]]

    out = pl.pallas_call(
        kernel,
        out_shape=jax.ShapeDtypeStruct((B_pad, num_classes), jnp.float32),
        in_specs=[_VMEM] * len(args),
        out_specs=_VMEM,
        scratch_shapes=[pltpu.VMEM((T, B_pad, 2 * hidden), jnp.float32),
                        pltpu.VMEM((T, B_pad, 2 * hidden), jnp.float32)],
    )(*args)
    return out[:B]


# ------------------------------ pure-JAX reference -------------------------------- #

def reference_forward(tokens, raw, *, num_layers, hidden):
    emb = jnp.take(raw["embedding"], tokens, axis=0)
    x = jnp.transpose(emb, (1, 0, 2))                           # [T, B, E]
    T, B, _ = x.shape
    hi = jax.lax.Precision.HIGHEST

    def run_dir(x_seq, w_ih, w_hh, b_ih, b_hh, reverse):
        H = hidden

        def step(carry, x_t):
            h, c = carry
            g = (jnp.dot(x_t, w_ih.T, precision=hi) + b_ih
                 + jnp.dot(h, w_hh.T, precision=hi) + b_hh)
            i = jax.nn.sigmoid(g[:, :H])
            f = jax.nn.sigmoid(g[:, H:2 * H])
            gg = jnp.tanh(g[:, 2 * H:3 * H])
            o = jax.nn.sigmoid(g[:, 3 * H:])
            c = f * c + i * gg
            h = o * jnp.tanh(c)
            return (h, c), h

        xs = x_seq[::-1] if reverse else x_seq
        (_, _), hs = lax.scan(step, (jnp.zeros((B, H)), jnp.zeros((B, H))), xs)
        return hs[::-1] if reverse else hs

    out = x
    for layer in range(num_layers):
        p = raw["lstm"][layer]
        hf = run_dir(out, p["w_ih"], p["w_hh"], p["b_ih"], p["b_hh"], False)
        hb = run_dir(out, p["w_ih_r"], p["w_hh_r"], p["b_ih_r"], p["b_hh_r"], True)
        out = jnp.concatenate([hf, hb], axis=-1)
    return jnp.dot(out[-1], raw["fc_w"].T, precision=hi) + raw["fc_b"]


# ------------------------------------- main --------------------------------------- #

if __name__ == "__main__":
    num_classes = 4
    word_vocab_size = 50
    num_lstm_layers = 2
    embedding_dim1, embedding_dim2, embedding_dim3 = 16, 16, 16
    emb_dim = embedding_dim1 + embedding_dim2 + embedding_dim3    # 48
    hidden_dim = 32

    batch, seq_len = 2, 8

    key = jax.random.PRNGKey(0)
    k_params, k_tokens = jax.random.split(key)
    raw = init_params(k_params, vocab=word_vocab_size, emb_dim=emb_dim,
                      hidden=hidden_dim, num_layers=num_lstm_layers,
                      num_classes=num_classes)
    fused = prepare_fused_params(raw, hidden=hidden_dim, num_layers=num_lstm_layers)
    tokens = jax.random.randint(k_tokens, (batch, seq_len), 0, word_vocab_size,
                                dtype=jnp.int32)

    out = bilstm_forward(tokens, fused, num_layers=num_lstm_layers, hidden=hidden_dim)
    out = jax.block_until_ready(out)

    assert out.shape == (batch, num_classes), out.shape
    assert out.dtype == jnp.float32
    assert bool(jnp.all(jnp.isfinite(out)))

    ref = jax.block_until_ready(
        reference_forward(tokens, raw, num_layers=num_lstm_layers, hidden=hidden_dim))
    # Kernel feeds bf16 operands to the MXU (f32 accumulation); reference is pure f32,
    # so allow a slightly looser (but still bug-detecting) tolerance.
    max_err = float(jnp.max(jnp.abs(out - ref)))
    assert max_err < 2e-2, f"mismatch vs reference: max abs err {max_err}"

    print("KERNEL_OK")
</pallas_src>

<mosaic_0001>
module attributes {stable_mosaic.version = 11 : i64} {
  func.func @_bilstm_fused_kernel(%arg0: memref<8x8x48xf32, #tpu.memory_space<vmem>>, %arg1: memref<48x256xbf16, #tpu.memory_space<vmem>>, %arg2: memref<64x256xbf16, #tpu.memory_space<vmem>>, %arg3: memref<1x256xf32, #tpu.memory_space<vmem>>, %arg4: memref<64x256xbf16, #tpu.memory_space<vmem>>, %arg5: memref<64x256xbf16, #tpu.memory_space<vmem>>, %arg6: memref<1x256xf32, #tpu.memory_space<vmem>>, %arg7: memref<64x4xbf16, #tpu.memory_space<vmem>>, %arg8: memref<1x4xf32, #tpu.memory_space<vmem>>, %arg9: memref<8x4xf32, #tpu.memory_space<vmem>>, %arg10: memref<8x8x64xf32, #tpu.memory_space<vmem>>, %arg11: memref<8x8x64xf32, #tpu.memory_space<vmem>>) attributes {dimension_semantics = [], scalar_prefetch = 0 : i64, scratch_operands = 2 : i64, tpu.core_type = #tpu.core_type<tc>} {
    %0 = tpu.iota {dimensions = array<i32: 1>} : vector<8x256xi32>
    %c64_i32 = arith.constant 64 : i32
    %c0_i32 = arith.constant 0 : i32
    %1 = arith.cmpi eq, %c64_i32, %c0_i32 : i32
    %c1_i32 = arith.constant 1 : i32
    %2 = arith.select %1, %c1_i32, %c64_i32 : i32
    %3 = vector.broadcast %2 : i32 to vector<8x256xi32>
    %4 = arith.remsi %0, %3 : vector<8x256xi32>
    %c0_i32_0 = arith.constant 0 : i32
    %5 = vector.broadcast %c0_i32_0 : i32 to vector<8x256xi32>
    %6 = arith.cmpi ne, %4, %5 : vector<8x256xi32>
    %c0_i32_1 = arith.constant 0 : i32
    %7 = vector.broadcast %c0_i32_1 : i32 to vector<8x256xi32>
    %8 = arith.cmpi slt, %4, %7 : vector<8x256xi32>
    %c0_i32_2 = arith.constant 0 : i32
    %9 = arith.cmpi slt, %2, %c0_i32_2 : i32
    %10 = vector.broadcast %9 : i1 to vector<8x256xi1>
    %11 = vector.broadcast %10 : vector<8x256xi1> to vector<8x256xi1>
    %12 = arith.xori %8, %11 : vector<8x256xi1>
    %13 = arith.andi %12, %6 : vector<8x256xi1>
    %14 = vector.broadcast %2 : i32 to vector<8x256xi32>
    %15 = arith.addi %4, %14 : vector<8x256xi32>
    %16 = arith.select %13, %15, %4 : vector<8x256xi1>, vector<8x256xi32>
    %c32_i32 = arith.constant 32 : i32
    %17 = vector.broadcast %c32_i32 : i32 to vector<8x256xi32>
    %18 = arith.cmpi slt, %16, %17 : vector<8x256xi32>
    %c128_i32 = arith.constant 128 : i32
    %19 = vector.broadcast %c128_i32 : i32 to vector<8x256xi32>
    %20 = arith.cmpi sge, %0, %19 : vector<8x256xi32>
    %c192_i32 = arith.constant 192 : i32
    %21 = vector.broadcast %c192_i32 : i32 to vector<8x256xi32>
    %22 = arith.cmpi slt, %0, %21 : vector<8x256xi32>
    %23 = arith.andi %20, %22 : vector<8x256xi1>
    %24 = tpu.iota {dimensions = array<i32: 1>} : vector<8x64xi32>
    %c32_i32_3 = arith.constant 32 : i32
    %25 = vector.broadcast %c32_i32_3 : i32 to vector<8x64xi32>
    %26 = arith.cmpi slt, %24, %25 : vector<8x64xi32>
    %c0 = arith.constant 0 : index
    %c0_4 = arith.constant 0 : index
    %c0_5 = arith.constant 0 : index
    %27 = vector.load %arg0[%c0, %c0_4, %c0_5] : memref<8x8x48xf32, #tpu.memory_space<vmem>>, vector<8x8x48xf32>
    %28 = vector.shape_cast %27 : vector<8x8x48xf32> to vector<64x48xf32>
    %c0_6 = arith.constant 0 : index
    %c0_7 = arith.constant 0 : index
    %29 = vector.load %arg1[%c0_6, %c0_7] : memref<48x256xbf16, #tpu.memory_space<vmem>>, vector<48x256xbf16>
    %c0_8 = arith.constant 0 : index
    %c0_9 = arith.constant 0 : index
    %30 = vector.load %arg2[%c0_8, %c0_9] : memref<64x256xbf16, #tpu.memory_space<vmem>>, vector<64x256xbf16>
    %c0_10 = arith.constant 0 : index
    %c0_11 = arith.constant 0 : index
    %31 = vector.load %arg3[%c0_10, %c0_11] : memref<1x256xf32, #tpu.memory_space<vmem>>, vector<1x256xf32>
    %32 = arith.truncf %28 : vector<64x48xf32> to vector<64x48xbf16>
    %cst = arith.constant dense<0.000000e+00> : vector<64x256xf32>
    %33 = tpu.matmul %32, %29, %cst {dimension_numbers = #tpu.dot_dimension_numbers<[1], [0], [0], [1], [0, 0, 1, 1], [], []>} : vector<64x48xbf16>, vector<48x256xbf16>, vector<64x256xf32> -> vector<64x256xf32>
    %34 = vector.broadcast %31 : vector<1x256xf32> to vector<64x256xf32>
    %35 = arith.addf %33, %34 : vector<64x256xf32>
    %36 = vector.shape_cast %35 : vector<64x256xf32> to vector<8x8x256xf32>
    %37 = vector.extract_strided_slice %36 {offsets = [0, 0, 0], sizes = [1, 8, 256], strides = [1, 1, 1]} : vector<8x8x256xf32> to vector<1x8x256xf32>
    %38 = vector.shape_cast %37 : vector<1x8x256xf32> to vector<8x256xf32>
    %39 = vector.extract_strided_slice %36 {offsets = [7, 0, 0], sizes = [1, 8, 256], strides = [1, 1, 1]} : vector<8x8x256xf32> to vector<1x8x256xf32>
    %40 = vector.shape_cast %39 : vector<1x8x256xf32> to vector<8x256xf32>
    %41 = arith.select %18, %38, %40 : vector<8x256xi1>, vector<8x256xf32>
    %42 = vector.extract_strided_slice %36 {offsets = [1, 0, 0], sizes = [1, 8, 256], strides = [1, 1, 1]} : vector<8x8x256xf32> to vector<1x8x256xf32>
    %43 = vector.shape_cast %42 : vector<1x8x256xf32> to vector<8x256xf32>
    %44 = vector.extract_strided_slice %36 {offsets = [6, 0, 0], sizes = [1, 8, 256], strides = [1, 1, 1]} : vector<8x8x256xf32> to vector<1x8x256xf32>
    %45 = vector.shape_cast %44 : vector<1x8x256xf32> to vector<8x256xf32>
    %46 = arith.select %18, %43, %45 : vector<8x256xi1>, vector<8x256xf32>
    %47 = vector.extract_strided_slice %36 {offsets = [2, 0, 0], sizes = [1, 8, 256], strides = [1, 1, 1]} : vector<8x8x256xf32> to vector<1x8x256xf32>
    %48 = vector.shape_cast %47 : vector<1x8x256xf32> to vector<8x256xf32>
    %49 = vector.extract_strided_slice %36 {offsets = [5, 0, 0], sizes = [1, 8, 256], strides = [1, 1, 1]} : vector<8x8x256xf32> to vector<1x8x256xf32>
    %50 = vector.shape_cast %49 : vector<1x8x256xf32> to vector<8x256xf32>
    %51 = arith.select %18, %48, %50 : vector<8x256xi1>, vector<8x256xf32>
    %52 = vector.extract_strided_slice %36 {offsets = [3, 0, 0], sizes = [1, 8, 256], strides = [1, 1, 1]} : vector<8x8x256xf32> to vector<1x8x256xf32>
    %53 = vector.shape_cast %52 : vector<1x8x256xf32> to vector<8x256xf32>
    %54 = vector.extract_strided_slice %36 {offsets = [4, 0, 0], sizes = [1, 8, 256], strides = [1, 1, 1]} : vector<8x8x256xf32> to vector<1x8x256xf32>
    %55 = vector.shape_cast %54 : vector<1x8x256xf32> to vector<8x256xf32>
    %56 = arith.select %18, %53, %55 : vector<8x256xi1>, vector<8x256xf32>
    %57 = vector.extract_strided_slice %36 {offsets = [4, 0, 0], sizes = [1, 8, 256], strides = [1, 1, 1]} : vector<8x8x256xf32> to vector<1x8x256xf32>
    %58 = vector.shape_cast %57 : vector<1x8x256xf32> to vector<8x256xf32>
    %59 = vector.extract_strided_slice %36 {offsets = [3, 0, 0], sizes = [1, 8, 256], strides = [1, 1, 1]} : vector<8x8x256xf32> to vector<1x8x256xf32>
    %60 = vector.shape_cast %59 : vector<1x8x256xf32> to vector<8x256xf32>
    %61 = arith.select %18, %58, %60 : vector<8x256xi1>, vector<8x256xf32>
    %62 = vector.extract_strided_slice %36 {offsets = [5, 0, 0], sizes = [1, 8, 256], strides = [1, 1, 1]} : vector<8x8x256xf32> to vector<1x8x256xf32>
    %63 = vector.shape_cast %62 : vector<1x8x256xf32> to vector<8x256xf32>
    %64 = vector.extract_strided_slice %36 {offsets = [2, 0, 0], sizes = [1, 8, 256], strides = [1, 1, 1]} : vector<8x8x256xf32> to vector<1x8x256xf32>
    %65 = vector.shape_cast %64 : vector<1x8x256xf32> to vector<8x256xf32>
    %66 = arith.select %18, %63, %65 : vector<8x256xi1>, vector<8x256xf32>
    %67 = vector.extract_strided_slice %36 {offsets = [6, 0, 0], sizes = [1, 8, 256], strides = [1, 1, 1]} : vector<8x8x256xf32> to vector<1x8x256xf32>
    %68 = vector.shape_cast %67 : vector<1x8x256xf32> to vector<8x256xf32>
    %69 = vector.extract_strided_slice %36 {offsets = [1, 0, 0], sizes = [1, 8, 256], strides = [1, 1, 1]} : vector<8x8x256xf32> to vector<1x8x256xf32>
    %70 = vector.shape_cast %69 : vector<1x8x256xf32> to vector<8x256xf32>
    %71 = arith.select %18, %68, %70 : vector<8x256xi1>, vector<8x256xf32>
    %72 = vector.extract_strided_slice %36 {offsets = [7, 0, 0], sizes = [1, 8, 256], strides = [1, 1, 1]} : vector<8x8x256xf32> to vector<1x8x256xf32>
    %73 = vector.shape_cast %72 : vector<1x8x256xf32> to vector<8x256xf32>
    %74 = vector.extract_strided_slice %36 {offsets = [0, 0, 0], sizes = [1, 8, 256], strides = [1, 1, 1]} : vector<8x8x256xf32> to vector<1x8x256xf32>
    %75 = vector.shape_cast %74 : vector<1x8x256xf32> to vector<8x256xf32>
    %76 = arith.select %18, %73, %75 : vector<8x256xi1>, vector<8x256xf32>
    %cst_12 = arith.constant 0.000000e+00 : f32
    %77 = vector.broadcast %cst_12 : f32 to vector<8x64xf32>
    %cst_13 = arith.constant 0.000000e+00 : f32
    %78 = vector.broadcast %cst_13 : f32 to vector<8x64xf32>
    %79 = arith.truncf %77 : vector<8x64xf32> to vector<8x64xbf16>
    %cst_14 = arith.constant dense<0.000000e+00> : vector<8x256xf32>
    %80 = tpu.matmul %79, %30, %cst_14 {dimension_numbers = #tpu.dot_dimension_numbers<[1], [0], [0], [1], [0, 0, 1, 1], [], []>} : vector<8x64xbf16>, vector<64x256xbf16>, vector<8x256xf32> -> vector<8x256xf32>
    %81 = arith.addf %80, %41 : vector<8x256xf32>
    %82 = arith.negf %81 : vector<8x256xf32>
    %83 = math.exp %82 : vector<8x256xf32>
    %cst_15 = arith.constant 1.000000e+00 : f32
    %84 = vector.broadcast %cst_15 : f32 to vector<8x256xf32>
    %85 = arith.addf %84, %83 : vector<8x256xf32>
    %86 = arith.divf %84, %85 : vector<8x256xf32>
    %cst_16 = arith.constant 2.000000e+00 : f32
    %87 = vector.broadcast %cst_16 : f32 to vector<8x256xf32>
    %88 = arith.mulf %87, %86 : vector<8x256xf32>
    %cst_17 = arith.constant 1.000000e+00 : f32
    %89 = vector.broadcast %cst_17 : f32 to vector<8x256xf32>
    %90 = arith.subf %88, %89 : vector<8x256xf32>
    %91 = arith.select %23, %90, %86 : vector<8x256xi1>, vector<8x256xf32>
    %92 = vector.extract_strided_slice %91 {offsets = [0, 0], sizes = [8, 64], strides = [1, 1]} : vector<8x256xf32> to vector<8x64xf32>
    %93 = vector.extract_strided_slice %91 {offsets = [0, 64], sizes = [8, 64], strides = [1, 1]} : vector<8x256xf32> to vector<8x64xf32>
    %94 = vector.extract_strided_slice %91 {offsets = [0, 128], sizes = [8, 64], strides = [1, 1]} : vector<8x256xf32> to vector<8x64xf32>
    %95 = vector.extract_strided_slice %91 {offsets = [0, 192], sizes = [8, 64], strides = [1, 1]} : vector<8x256xf32> to vector<8x64xf32>
    %96 = arith.mulf %93, %78 : vector<8x64xf32>
    %97 = arith.mulf %92, %94 : vector<8x64xf32>
    %98 = arith.addf %96, %97 : vector<8x64xf32>
    %99 = math.tanh %98 : vector<8x64xf32>
    %100 = arith.mulf %95, %99 : vector<8x64xf32>
    %c0_18 = arith.constant 0 : index
    %c0_19 = arith.constant 0 : index
    %c0_20 = arith.constant 0 : index
    %101 = vector.load %arg10[%c0_18, %c0_19, %c0_20] : memref<8x8x64xf32, #tpu.memory_space<vmem>>, vector<1x8x64xf32>
    %102 = vector.shape_cast %101 : vector<1x8x64xf32> to vector<8x64xf32>
    %103 = vector.shape_cast %100 : vector<8x64xf32> to vector<1x8x64xf32>
    tpu.vector_store %arg10[%c0_18, %c0_19, %c0_20], %103 {strides = array<i32>} : memref<8x8x64xf32, #tpu.memory_space<vmem>>, vector<1x8x64xf32>,
    %c7 = arith.constant 7 : index
    %c0_21 = arith.constant 0 : index
    %c0_22 = arith.constant 0 : index
    %104 = vector.load %arg11[%c7, %c0_21, %c0_22] : memref<8x8x64xf32, #tpu.memory_space<vmem>>, vector<1x8x64xf32>
    %105 = vector.shape_cast %104 : vector<1x8x64xf32> to vector<8x64xf32>
    %106 = vector.shape_cast %100 : vector<8x64xf32> to vector<1x8x64xf32>
    tpu.vector_store %arg11[%c7, %c0_21, %c0_22], %106 {strides = array<i32>} : memref<8x8x64xf32, #tpu.memory_space<vmem>>, vector<1x8x64xf32>,
    %107 = arith.truncf %100 : vector<8x64xf32> to vector<8x64xbf16>
    %cst_23 = arith.constant dense<0.000000e+00> : vector<8x256xf32>
    %108 = tpu.matmul %107, %30, %cst_23 {dimension_numbers = #tpu.dot_dimension_numbers<[1], [0], [0], [1], [0, 0, 1, 1], [], []>} : vector<8x64xbf16>, vector<64x256xbf16>, vector<8x256xf32> -> vector<8x256xf32>
    %109 = arith.addf %108, %46 : vector<8x256xf32>
    %110 = arith.negf %109 : vector<8x256xf32>
    %111 = math.exp %110 : vector<8x256xf32>
    %cst_24 = arith.constant 1.000000e+00 : f32
    %112 = vector.broadcast %cst_24 : f32 to vector<8x256xf32>
    %113 = arith.addf %112, %111 : vector<8x256xf32>
    %114 = arith.divf %112, %113 : vector<8x256xf32>
    %cst_25 = arith.constant 2.000000e+00 : f32
    %115 = vector.broadcast %cst_25 : f32 to vector<8x256xf32>
    %116 = arith.mulf %115, %114 : vector<8x256xf32>
    %cst_26 = arith.constant 1.000000e+00 : f32
    %117 = vector.broadcast %cst_26 : f32 to vector<8x256xf32>
    %118 = arith.subf %116, %117 : vector<8x256xf32>
    %119 = arith.select %23, %118, %114 : vector<8x256xi1>, vector<8x256xf32>
    %120 = vector.extract_strided_slice %119 {offsets = [0, 0], sizes = [8, 64], strides = [1, 1]} : vector<8x256xf32> to vector<8x64xf32>
    %121 = vector.extract_strided_slice %119 {offsets = [0, 64], sizes = [8, 64], strides = [1, 1]} : vector<8x256xf32> to vector<8x64xf32>
    %122 = vector.extract_strided_slice %119 {offsets = [0, 128], sizes = [8, 64], strides = [1, 1]} : vector<8x256xf32> to vector<8x64xf32>
    %123 = vector.extract_strided_slice %119 {offsets = [0, 192], sizes = [8, 64], strides = [1, 1]} : vector<8x256xf32> to vector<8x64xf32>
    %124 = arith.mulf %121, %98 : vector<8x64xf32>
    %125 = arith.mulf %120, %122 : vector<8x64xf32>
    %126 = arith.addf %124, %125 : vector<8x64xf32>
    %127 = math.tanh %126 : vector<8x64xf32>
    %128 = arith.mulf %123, %127 : vector<8x64xf32>
    %c1 = arith.constant 1 : index
    %c0_27 = arith.constant 0 : index
    %c0_28 = arith.constant 0 : index
    %129 = vector.load %arg10[%c1, %c0_27, %c0_28] : memref<8x8x64xf32, #tpu.memory_space<vmem>>, vector<1x8x64xf32>
    %130 = vector.shape_cast %129 : vector<1x8x64xf32> to vector<8x64xf32>
    %131 = vector.shape_cast %128 : vector<8x64xf32> to vector<1x8x64xf32>
    tpu.vector_store %arg10[%c1, %c0_27, %c0_28], %131 {strides = array<i32>} : memref<8x8x64xf32, #tpu.memory_space<vmem>>, vector<1x8x64xf32>,
    %c6 = arith.constant 6 : index
    %c0_29 = arith.constant 0 : index
    %c0_30 = arith.constant 0 : index
    %132 = vector.load %arg11[%c6, %c0_29, %c0_30] : memref<8x8x64xf32, #tpu.memory_space<vmem>>, vector<1x8x64xf32>
    %133 = vector.shape_cast %132 : vector<1x8x64xf32> to vector<8x64xf32>
    %134 = vector.shape_cast %128 : vector<8x64xf32> to vector<1x8x64xf32>
    tpu.vector_store %arg11[%c6, %c0_29, %c0_30], %134 {strides = array<i32>} : memref<8x8x64xf32, #tpu.memory_space<vmem>>, vector<1x8x64xf32>,
    %135 = arith.truncf %128 : vector<8x64xf32> to vector<8x64xbf16>
    %cst_31 = arith.constant dense<0.000000e+00> : vector<8x256xf32>
    %136 = tpu.matmul %135, %30, %cst_31 {dimension_numbers = #tpu.dot_dimension_numbers<[1], [0], [0], [1], [0, 0, 1, 1], [], []>} : vector<8x64xbf16>, vector<64x256xbf16>, vector<8x256xf32> -> vector<8x256xf32>
    %137 = arith.addf %136, %51 : vector<8x256xf32>
    %138 = arith.negf %137 : vector<8x256xf32>
    %139 = math.exp %138 : vector<8x256xf32>
    %cst_32 = arith.constant 1.000000e+00 : f32
    %140 = vector.broadcast %cst_32 : f32 to vector<8x256xf32>
    %141 = arith.addf %140, %139 : vector<8x256xf32>
    %142 = arith.divf %140, %141 : vector<8x256xf32>
    %cst_33 = arith.constant 2.000000e+00 : f32
    %143 = vector.broadcast %cst_33 : f32 to vector<8x256xf32>
    %144 = arith.mulf %143, %142 : vector<8x256xf32>
    %cst_34 = arith.constant 1.000000e+00 : f32
    %145 = vector.broadcast %cst_34 : f32 to vector<8x256xf32>
    %146 = arith.subf %144, %145 : vector<8x256xf32>
    %147 = arith.select %23, %146, %142 : vector<8x256xi1>, vector<8x256xf32>
    %148 = vector.extract_strided_slice %147 {offsets = [0, 0], sizes = [8, 64], strides = [1, 1]} : vector<8x256xf32> to vector<8x64xf32>
    %149 = vector.extract_strided_slice %147 {offsets = [0, 64], sizes = [8, 64], strides = [1, 1]} : vector<8x256xf32> to vector<8x64xf32>
    %150 = vector.extract_strided_slice %147 {offsets = [0, 128], sizes = [8, 64], strides = [1, 1]} : vector<8x256xf32> to vector<8x64xf32>
    %151 = vector.extract_strided_slice %147 {offsets = [0, 192], sizes = [8, 64], strides = [1, 1]} : vector<8x256xf32> to vector<8x64xf32>
    %152 = arith.mulf %149, %126 : vector<8x64xf32>
    %153 = arith.mulf %148, %150 : vector<8x64xf32>
    %154 = arith.addf %152, %153 : vector<8x64xf32>
    %155 = math.tanh %154 : vector<8x64xf32>
    %156 = arith.mulf %151, %155 : vector<8x64xf32>
    %c2 = arith.constant 2 : index
    %c0_35 = arith.constant 0 : index
    %c0_36 = arith.constant 0 : index
    %157 = vector.load %arg10[%c2, %c0_35, %c0_36] : memref<8x8x64xf32, #tpu.memory_space<vmem>>, vector<1x8x64xf32>
    %158 = vector.shape_cast %157 : vector<1x8x64xf32> to vector<8x64xf32>
    %159 = vector.shape_cast %156 : vector<8x64xf32> to vector<1x8x64xf32>
    tpu.vector_store %arg10[%c2, %c0_35, %c0_36], %159 {strides = array<i32>} : memref<8x8x64xf32, #tpu.memory_space<vmem>>, vector<1x8x64xf32>,
    %c5 = arith.constant 5 : index
    %c0_37 = arith.constant 0 : index
    %c0_38 = arith.constant 0 : index
    %160 = vector.load %arg11[%c5, %c0_37, %c0_38] : memref<8x8x64xf32, #tpu.memory_space<vmem>>, vector<1x8x64xf32>
    %161 = vector.shape_cast %160 : vector<1x8x64xf32> to vector<8x64xf32>
    %162 = vector.shape_cast %156 : vector<8x64xf32> to vector<1x8x64xf32>
    tpu.vector_store %arg11[%c5, %c0_37, %c0_38], %162 {strides = array<i32>} : memref<8x8x64xf32, #tpu.memory_space<vmem>>, vector<1x8x64xf32>,
    %163 = arith.truncf %156 : vector<8x64xf32> to vector<8x64xbf16>
    %cst_39 = arith.constant dense<0.000000e+00> : vector<8x256xf32>
    %164 = tpu.matmul %163, %30, %cst_39 {dimension_numbers = #tpu.dot_dimension_numbers<[1], [0], [0], [1], [0, 0, 1, 1], [], []>} : vector<8x64xbf16>, vector<64x256xbf16>, vector<8x256xf32> -> vector<8x256xf32>
    %165 = arith.addf %164, %56 : vector<8x256xf32>
    %166 = arith.negf %165 : vector<8x256xf32>
    %167 = math.exp %166 : vector<8x256xf32>
    %cst_40 = arith.constant 1.000000e+00 : f32
    %168 = vector.broadcast %cst_40 : f32 to vector<8x256xf32>
    %169 = arith.addf %168, %167 : vector<8x256xf32>
    %170 = arith.divf %168, %169 : vector<8x256xf32>
    %cst_41 = arith.constant 2.000000e+00 : f32
    %171 = vector.broadcast %cst_41 : f32 to vector<8x256xf32>
    %172 = arith.mulf %171, %170 : vector<8x256xf32>
    %cst_42 = arith.constant 1.000000e+00 : f32
    %173 = vector.broadcast %cst_42 : f32 to vector<8x256xf32>
    %174 = arith.subf %172, %173 : vector<8x256xf32>
    %175 = arith.select %23, %174, %170 : vector<8x256xi1>, vector<8x256xf32>
    %176 = vector.extract_strided_slice %175 {offsets = [0, 0], sizes = [8, 64], strides = [1, 1]} : vector<8x256xf32> to vector<8x64xf32>
    %177 = vector.extract_strided_slice %175 {offsets = [0, 64], sizes = [8, 64], strides = [1, 1]} : vector<8x256xf32> to vector<8x64xf32>
    %178 = vector.extract_strided_slice %175 {offsets = [0, 128], sizes = [8, 64], strides = [1, 1]} : vector<8x256xf32> to vector<8x64xf32>
    %179 = vector.extract_strided_slice %175 {offsets = [0, 192], sizes = [8, 64], strides = [1, 1]} : vector<8x256xf32> to vector<8x64xf32>
    %180 = arith.mulf %177, %154 : vector<8x64xf32>
    %181 = arith.mulf %176, %178 : vector<8x64xf32>
    %182 = arith.addf %180, %181 : vector<8x64xf32>
    %183 = math.tanh %182 : vector<8x64xf32>
    %184 = arith.mulf %179, %183 : vector<8x64xf32>
    %c3 = arith.constant 3 : index
    %c0_43 = arith.constant 0 : index
    %c0_44 = arith.constant 0 : index
    %185 = vector.load %arg10[%c3, %c0_43, %c0_44] : memref<8x8x64xf32, #tpu.memory_space<vmem>>, vector<1x8x64xf32>
    %186 = vector.shape_cast %185 : vector<1x8x64xf32> to vector<8x64xf32>
    %187 = vector.shape_cast %184 : vector<8x64xf32> to vector<1x8x64xf32>
    tpu.vector_store %arg10[%c3, %c0_43, %c0_44], %187 {strides = array<i32>} : memref<8x8x64xf32, #tpu.memory_space<vmem>>, vector<1x8x64xf32>,
    %c4 = arith.constant 4 : index
    %c0_45 = arith.constant 0 : index
    %c0_46 = arith.constant 0 : index
    %188 = vector.load %arg11[%c4, %c0_45, %c0_46] : memref<8x8x64xf32, #tpu.memory_space<vmem>>, vector<1x8x64xf32>
    %189 = vector.shape_cast %188 : vector<1x8x64xf32> to vector<8x64xf32>
    %190 = vector.shape_cast %184 : vector<8x64xf32> to vector<1x8x64xf32>
    tpu.vector_store %arg11[%c4, %c0_45, %c0_46], %190 {strides = array<i32>} : memref<8x8x64xf32, #tpu.memory_space<vmem>>, vector<1x8x64xf32>,
    %191 = arith.truncf %184 : vector<8x64xf32> to vector<8x64xbf16>
    %cst_47 = arith.constant dense<0.000000e+00> : vector<8x256xf32>
    %192 = tpu.matmul %191, %30, %cst_47 {dimension_numbers = #tpu.dot_dimension_numbers<[1], [0], [0], [1], [0, 0, 1, 1], [], []>} : vector<8x64xbf16>, vector<64x256xbf16>, vector<8x256xf32> -> vector<8x256xf32>
    %193 = arith.addf %192, %61 : vector<8x256xf32>
    %194 = arith.negf %193 : vector<8x256xf32>
    %195 = math.exp %194 : vector<8x256xf32>
    %cst_48 = arith.constant 1.000000e+00 : f32
    %196 = vector.broadcast %cst_48 : f32 to vector<8x256xf32>
    %197 = arith.addf %196, %195 : vector<8x256xf32>
    %198 = arith.divf %196, %197 : vector<8x256xf32>
    %cst_49 = arith.constant 2.000000e+00 : f32
    %199 = vector.broadcast %cst_49 : f32 to vector<8x256xf32>
    %200 = arith.mulf %199, %198 : vector<8x256xf32>
    %cst_50 = arith.constant 1.000000e+00 : f32
    %201 = vector.broadcast %cst_50 : f32 to vector<8x256xf32>
    %202 = arith.subf %200, %201 : vector<8x256xf32>
    %203 = arith.select %23, %202, %198 : vector<8x256xi1>, vector<8x256xf32>
    %204 = vector.extract_strided_slice %203 {offsets = [0, 0], sizes = [8, 64], strides = [1, 1]} : vector<8x256xf32> to vector<8x64xf32>
    %205 = vector.extract_strided_slice %203 {offsets = [0, 64], sizes = [8, 64], strides = [1, 1]} : vector<8x256xf32> to vector<8x64xf32>
    %206 = vector.extract_strided_slice %203 {offsets = [0, 128], sizes = [8, 64], strides = [1, 1]} : vector<8x256xf32> to vector<8x64xf32>
    %207 = vector.extract_strided_slice %203 {offsets = [0, 192], sizes = [8, 64], strides = [1, 1]} : vector<8x256xf32> to vector<8x64xf32>
    %208 = arith.mulf %205, %182 : vector<8x64xf32>
    %209 = arith.mulf %204, %206 : vector<8x64xf32>
    %210 = arith.addf %208, %209 : vector<8x64xf32>
    %211 = math.tanh %210 : vector<8x64xf32>
    %212 = arith.mulf %207, %211 : vector<8x64xf32>
    %c4_51 = arith.constant 4 : index
    %c0_52 = arith.constant 0 : index
    %c0_53 = arith.constant 0 : index
    %213 = vector.load %arg10[%c4_51, %c0_52, %c0_53] : memref<8x8x64xf32, #tpu.memory_space<vmem>>, vector<1x8x64xf32>
    %214 = vector.shape_cast %213 : vector<1x8x64xf32> to vector<8x64xf32>
    %215 = vector.shape_cast %212 : vector<8x64xf32> to vector<1x8x64xf32>
    tpu.vector_store %arg10[%c4_51, %c0_52, %c0_53], %215 {strides = array<i32>} : memref<8x8x64xf32, #tpu.memory_space<vmem>>, vector<1x8x64xf32>,
    %c3_54 = arith.constant 3 : index
    %c0_55 = arith.constant 0 : index
    %c0_56 = arith.constant 0 : index
    %216 = vector.load %arg11[%c3_54, %c0_55, %c0_56] : memref<8x8x64xf32, #tpu.memory_space<vmem>>, vector<1x8x64xf32>
    %217 = vector.shape_cast %216 : vector<1x8x64xf32> to vector<8x64xf32>
    %218 = vector.shape_cast %212 : vector<8x64xf32> to vector<1x8x64xf32>
    tpu.vector_store %arg11[%c3_54, %c0_55, %c0_56], %218 {strides = array<i32>} : memref<8x8x64xf32, #tpu.memory_space<vmem>>, vector<1x8x64xf32>,
    %219 = arith.truncf %212 : vector<8x64xf32> to vector<8x64xbf16>
    %cst_57 = arith.constant dense<0.000000e+00> : vector<8x256xf32>
    %220 = tpu.matmul %219, %30, %cst_57 {dimension_numbers = #tpu.dot_dimension_numbers<[1], [0], [0], [1], [0, 0, 1, 1], [], []>} : vector<8x64xbf16>, vector<64x256xbf16>, vector<8x256xf32> -> vector<8x256xf32>
    %221 = arith.addf %220, %66 : vector<8x256xf32>
    %222 = arith.negf %221 : vector<8x256xf32>
    %223 = math.exp %222 : vector<8x256xf32>
    %cst_58 = arith.constant 1.000000e+00 : f32
    %224 = vector.broadcast %cst_58 : f32 to vector<8x256xf32>
    %225 = arith.addf %224, %223 : vector<8x256xf32>
    %226 = arith.divf %224, %225 : vector<8x256xf32>
    %cst_59 = arith.constant 2.000000e+00 : f32
    %227 = vector.broadcast %cst_59 : f32 to vector<8x256xf32>
    %228 = arith.mulf %227, %226 : vector<8x256xf32>
    %cst_60 = arith.constant 1.000000e+00 : f32
    %229 = vector.broadcast %cst_60 : f32 to vector<8x256xf32>
    %230 = arith.subf %228, %229 : vector<8x256xf32>
    %231 = arith.select %23, %230, %226 : vector<8x256xi1>, vector<8x256xf32>
    %232 = vector.extract_strided_slice %231 {offsets = [0, 0], sizes = [8, 64], strides = [1, 1]} : vector<8x256xf32> to vector<8x64xf32>
    %233 = vector.extract_strided_slice %231 {offsets = [0, 64], sizes = [8, 64], strides = [1, 1]} : vector<8x256xf32> to vector<8x64xf32>
    %234 = vector.extract_strided_slice %231 {offsets = [0, 128], sizes = [8, 64], strides = [1, 1]} : vector<8x256xf32> to vector<8x64xf32>
    %235 = vector.extract_strided_slice %231 {offsets = [0, 192], sizes = [8, 64], strides = [1, 1]} : vector<8x256xf32> to vector<8x64xf32>
    %236 = arith.mulf %233, %210 : vector<8x64xf32>
    %237 = arith.mulf %232, %234 : vector<8x64xf32>
    %238 = arith.addf %236, %237 : vector<8x64xf32>
    %239 = math.tanh %238 : vector<8x64xf32>
    %240 = arith.mulf %235, %239 : vector<8x64xf32>
    %c5_61 = arith.constant 5 : index
    %c0_62 = arith.constant 0 : index
    %c0_63 = arith.constant 0 : index
    %241 = vector.load %arg10[%c5_61, %c0_62, %c0_63] : memref<8x8x64xf32, #tpu.memory_space<vmem>>, vector<1x8x64xf32>
    %242 = vector.shape_cast %241 : vector<1x8x64xf32> to vector<8x64xf32>
    %243 = vector.shape_cast %240 : vector<8x64xf32> to vector<1x8x64xf32>
    tpu.vector_store %arg10[%c5_61, %c0_62, %c0_63], %243 {strides = array<i32>} : memref<8x8x64xf32, #tpu.memory_space<vmem>>, vector<1x8x64xf32>,
    %c2_64 = arith.constant 2 : index
    %c0_65 = arith.constant 0 : index
    %c0_66 = arith.constant 0 : index
    %244 = vector.load %arg11[%c2_64, %c0_65, %c0_66] : memref<8x8x64xf32, #tpu.memory_space<vmem>>, vector<1x8x64xf32>
    %245 = vector.shape_cast %244 : vector<1x8x64xf32> to vector<8x64xf32>
    %246 = vector.shape_cast %240 : vector<8x64xf32> to vector<1x8x64xf32>
    tpu.vector_store %arg11[%c2_64, %c0_65, %c0_66], %246 {strides = array<i32>} : memref<8x8x64xf32, #tpu.memory_space<vmem>>, vector<1x8x64xf32>,
    %247 = arith.truncf %240 : vector<8x64xf32> to vector<8x64xbf16>
    %cst_67 = arith.constant dense<0.000000e+00> : vector<8x256xf32>
    %248 = tpu.matmul %247, %30, %cst_67 {dimension_numbers = #tpu.dot_dimension_numbers<[1], [0], [0], [1], [0, 0, 1, 1], [], []>} : vector<8x64xbf16>, vector<64x256xbf16>, vector<8x256xf32> -> vector<8x256xf32>
    %249 = arith.addf %248, %71 : vector<8x256xf32>
    %250 = arith.negf %249 : vector<8x256xf32>
    %251 = math.exp %250 : vector<8x256xf32>
    %cst_68 = arith.constant 1.000000e+00 : f32
    %252 = vector.broadcast %cst_68 : f32 to vector<8x256xf32>
    %253 = arith.addf %252, %251 : vector<8x256xf32>
    %254 = arith.divf %252, %253 : vector<8x256xf32>
    %cst_69 = arith.constant 2.000000e+00 : f32
    %255 = vector.broadcast %cst_69 : f32 to vector<8x256xf32>
    %256 = arith.mulf %255, %254 : vector<8x256xf32>
    %cst_70 = arith.constant 1.000000e+00 : f32
    %257 = vector.broadcast %cst_70 : f32 to vector<8x256xf32>
    %258 = arith.subf %256, %257 : vector<8x256xf32>
    %259 = arith.select %23, %258, %254 : vector<8x256xi1>, vector<8x256xf32>
    %260 = vector.extract_strided_slice %259 {offsets = [0, 0], sizes = [8, 64], strides = [1, 1]} : vector<8x256xf32> to vector<8x64xf32>
    %261 = vector.extract_strided_slice %259 {offsets = [0, 64], sizes = [8, 64], strides = [1, 1]} : vector<8x256xf32> to vector<8x64xf32>
    %262 = vector.extract_strided_slice %259 {offsets = [0, 128], sizes = [8, 64], strides = [1, 1]} : vector<8x256xf32> to vector<8x64xf32>
    %263 = vector.extract_strided_slice %259 {offsets = [0, 192], sizes = [8, 64], strides = [1, 1]} : vector<8x256xf32> to vector<8x64xf32>
    %264 = arith.mulf %261, %238 : vector<8x64xf32>
    %265 = arith.mulf %260, %262 : vector<8x64xf32>
    %266 = arith.addf %264, %265 : vector<8x64xf32>
    %267 = math.tanh %266 : vector<8x64xf32>
    %268 = arith.mulf %263, %267 : vector<8x64xf32>
    %c6_71 = arith.constant 6 : index
    %c0_72 = arith.constant 0 : index
    %c0_73 = arith.constant 0 : index
    %269 = vector.load %arg10[%c6_71, %c0_72, %c0_73] : memref<8x8x64xf32, #tpu.memory_space<vmem>>, vector<1x8x64xf32>
    %270 = vector.shape_cast %269 : vector<1x8x64xf32> to vector<8x64xf32>
    %271 = vector.shape_cast %268 : vector<8x64xf32> to vector<1x8x64xf32>
    tpu.vector_store %arg10[%c6_71, %c0_72, %c0_73], %271 {strides = array<i32>} : memref<8x8x64xf32, #tpu.memory_space<vmem>>, vector<1x8x64xf32>,
    %c1_74 = arith.constant 1 : index
    %c0_75 = arith.constant 0 : index
    %c0_76 = arith.constant 0 : index
    %272 = vector.load %arg11[%c1_74, %c0_75, %c0_76] : memref<8x8x64xf32, #tpu.memory_space<vmem>>, vector<1x8x64xf32>
    %273 = vector.shape_cast %272 : vector<1x8x64xf32> to vector<8x64xf32>
    %274 = vector.shape_cast %268 : vector<8x64xf32> to vector<1x8x64xf32>
    tpu.vector_store %arg11[%c1_74, %c0_75, %c0_76], %274 {strides = array<i32>} : memref<8x8x64xf32, #tpu.memory_space<vmem>>, vector<1x8x64xf32>,
    %275 = arith.truncf %268 : vector<8x64xf32> to vector<8x64xbf16>
    %cst_77 = arith.constant dense<0.000000e+00> : vector<8x256xf32>
    %276 = tpu.matmul %275, %30, %cst_77 {dimension_numbers = #tpu.dot_dimension_numbers<[1], [0], [0], [1], [0, 0, 1, 1], [], []>} : vector<8x64xbf16>, vector<64x256xbf16>, vector<8x256xf32> -> vector<8x256xf32>
    %277 = arith.addf %276, %76 : vector<8x256xf32>
    %278 = arith.negf %277 : vector<8x256xf32>
    %279 = math.exp %278 : vector<8x256xf32>
    %cst_78 = arith.constant 1.000000e+00 : f32
    %280 = vector.broadcast %cst_78 : f32 to vector<8x256xf32>
    %281 = arith.addf %280, %279 : vector<8x256xf32>
    %282 = arith.divf %280, %281 : vector<8x256xf32>
    %cst_79 = arith.constant 2.000000e+00 : f32
    %283 = vector.broadcast %cst_79 : f32 to vector<8x256xf32>
    %284 = arith.mulf %283, %282 : vector<8x256xf32>
    %cst_80 = arith.constant 1.000000e+00 : f32
    %285 = vector.broadcast %cst_80 : f32 to vector<8x256xf32>
    %286 = arith.subf %284, %285 : vector<8x256xf32>
    %287 = arith.select %23, %286, %282 : vector<8x256xi1>, vector<8x256xf32>
    %288 = vector.extract_strided_slice %287 {offsets = [0, 0], sizes = [8, 64], strides = [1, 1]} : vector<8x256xf32> to vector<8x64xf32>
    %289 = vector.extract_strided_slice %287 {offsets = [0, 64], sizes = [8, 64], strides = [1, 1]} : vector<8x256xf32> to vector<8x64xf32>
    %290 = vector.extract_strided_slice %287 {offsets = [0, 128], sizes = [8, 64], strides = [1, 1]} : vector<8x256xf32> to vector<8x64xf32>
    %291 = vector.extract_strided_slice %287 {offsets = [0, 192], sizes = [8, 64], strides = [1, 1]} : vector<8x256xf32> to vector<8x64xf32>
    %292 = arith.mulf %289, %266 : vector<8x64xf32>
    %293 = arith.mulf %288, %290 : vector<8x64xf32>
    %294 = arith.addf %292, %293 : vector<8x64xf32>
    %295 = math.tanh %294 : vector<8x64xf32>
    %296 = arith.mulf %291, %295 : vector<8x64xf32>
    %c7_81 = arith.constant 7 : index
    %c0_82 = arith.constant 0 : index
    %c0_83 = arith.constant 0 : index
    %297 = vector.load %arg10[%c7_81, %c0_82, %c0_83] : memref<8x8x64xf32, #tpu.memory_space<vmem>>, vector<1x8x64xf32>
    %298 = vector.shape_cast %297 : vector<1x8x64xf32> to vector<8x64xf32>
    %299 = vector.shape_cast %296 : vector<8x64xf32> to vector<1x8x64xf32>
    tpu.vector_store %arg10[%c7_81, %c0_82, %c0_83], %299 {strides = array<i32>} : memref<8x8x64xf32, #tpu.memory_space<vmem>>, vector<1x8x64xf32>,
    %c0_84 = arith.constant 0 : index
    %c0_85 = arith.constant 0 : index
    %c0_86 = arith.constant 0 : index
    %300 = vector.load %arg11[%c0_84, %c0_85, %c0_86] : memref<8x8x64xf32, #tpu.memory_space<vmem>>, vector<1x8x64xf32>
    %301 = vector.shape_cast %300 : vector<1x8x64xf32> to vector<8x64xf32>
    %302 = vector.shape_cast %296 : vector<8x64xf32> to vector<1x8x64xf32>
    tpu.vector_store %arg11[%c0_84, %c0_85, %c0_86], %302 {strides = array<i32>} : memref<8x8x64xf32, #tpu.memory_space<vmem>>, vector<1x8x64xf32>,
    %c0_87 = arith.constant 0 : index
    %c0_88 = arith.constant 0 : index
    %c0_89 = arith.constant 0 : index
    %303 = vector.load %arg10[%c0_87, %c0_88, %c0_89] : memref<8x8x64xf32, #tpu.memory_space<vmem>>, vector<8x8x64xf32>
    %c0_90 = arith.constant 0 : index
    %c0_91 = arith.constant 0 : index
    %c0_92 = arith.constant 0 : index
    %304 = vector.load %arg11[%c0_90, %c0_91, %c0_92] : memref<8x8x64xf32, #tpu.memory_space<vmem>>, vector<8x8x64xf32>
    %305 = vector.shape_cast %26 : vector<8x64xi1> to vector<1x8x64xi1>
    %306 = vector.broadcast %305 : vector<1x8x64xi1> to vector<8x8x64xi1>
    %307 = arith.select %306, %303, %304 : vector<8x8x64xi1>, vector<8x8x64xf32>
    %308 = vector.shape_cast %307 : vector<8x8x64xf32> to vector<64x64xf32>
    %c0_93 = arith.constant 0 : index
    %c0_94 = arith.constant 0 : index
    %309 = vector.load %arg4[%c0_93, %c0_94] : memref<64x256xbf16, #tpu.memory_space<vmem>>, vector<64x256xbf16>
    %c0_95 = arith.constant 0 : index
    %c0_96 = arith.constant 0 : index
    %310 = vector.load %arg5[%c0_95, %c0_96] : memref<64x256xbf16, #tpu.memory_space<vmem>>, vector<64x256xbf16>
    %c0_97 = arith.constant 0 : index
    %c0_98 = arith.constant 0 : index
    %311 = vector.load %arg6[%c0_97, %c0_98] : memref<1x256xf32, #tpu.memory_space<vmem>>, vector<1x256xf32>
    %312 = arith.truncf %308 : vector<64x64xf32> to vector<64x64xbf16>
    %cst_99 = arith.constant dense<0.000000e+00> : vector<64x256xf32>
    %313 = tpu.matmul %312, %309, %cst_99 {dimension_numbers = #tpu.dot_dimension_numbers<[1], [0], [0], [1], [0, 0, 1, 1], [], []>} : vector<64x64xbf16>, vector<64x256xbf16>, vector<64x256xf32> -> vector<64x256xf32>
    %314 = vector.broadcast %311 : vector<1x256xf32> to vector<64x256xf32>
    %315 = arith.addf %313, %314 : vector<64x256xf32>
    %316 = vector.shape_cast %315 : vector<64x256xf32> to vector<8x8x256xf32>
    %317 = vector.extract_strided_slice %316 {offsets = [0, 0, 0], sizes = [1, 8, 256], strides = [1, 1, 1]} : vector<8x8x256xf32> to vector<1x8x256xf32>
    %318 = vector.shape_cast %317 : vector<1x8x256xf32> to vector<8x256xf32>
    %319 = vector.extract_strided_slice %316 {offsets = [7, 0, 0], sizes = [1, 8, 256], strides = [1, 1, 1]} : vector<8x8x256xf32> to vector<1x8x256xf32>
    %320 = vector.shape_cast %319 : vector<1x8x256xf32> to vector<8x256xf32>
    %321 = arith.select %18, %318, %320 : vector<8x256xi1>, vector<8x256xf32>
    %322 = vector.extract_strided_slice %316 {offsets = [1, 0, 0], sizes = [1, 8, 256], strides = [1, 1, 1]} : vector<8x8x256xf32> to vector<1x8x256xf32>
    %323 = vector.shape_cast %322 : vector<1x8x256xf32> to vector<8x256xf32>
    %324 = vector.extract_strided_slice %316 {offsets = [6, 0, 0], sizes = [1, 8, 256], strides = [1, 1, 1]} : vector<8x8x256xf32> to vector<1x8x256xf32>
    %325 = vector.shape_cast %324 : vector<1x8x256xf32> to vector<8x256xf32>
    %326 = arith.select %18, %323, %325 : vector<8x256xi1>, vector<8x256xf32>
    %327 = vector.extract_strided_slice %316 {offsets = [2, 0, 0], sizes = [1, 8, 256], strides = [1, 1, 1]} : vector<8x8x256xf32> to vector<1x8x256xf32>
    %328 = vector.shape_cast %327 : vector<1x8x256xf32> to vector<8x256xf32>
    %329 = vector.extract_strided_slice %316 {offsets = [5, 0, 0], sizes = [1, 8, 256], strides = [1, 1, 1]} : vector<8x8x256xf32> to vector<1x8x256xf32>
    %330 = vector.shape_cast %329 : vector<1x8x256xf32> to vector<8x256xf32>
    %331 = arith.select %18, %328, %330 : vector<8x256xi1>, vector<8x256xf32>
    %332 = vector.extract_strided_slice %316 {offsets = [3, 0, 0], sizes = [1, 8, 256], strides = [1, 1, 1]} : vector<8x8x256xf32> to vector<1x8x256xf32>
    %333 = vector.shape_cast %332 : vector<1x8x256xf32> to vector<8x256xf32>
    %334 = vector.extract_strided_slice %316 {offsets = [4, 0, 0], sizes = [1, 8, 256], strides = [1, 1, 1]} : vector<8x8x256xf32> to vector<1x8x256xf32>
    %335 = vector.shape_cast %334 : vector<1x8x256xf32> to vector<8x256xf32>
    %336 = arith.select %18, %333, %335 : vector<8x256xi1>, vector<8x256xf32>
    %337 = vector.extract_strided_slice %316 {offsets = [4, 0, 0], sizes = [1, 8, 256], strides = [1, 1, 1]} : vector<8x8x256xf32> to vector<1x8x256xf32>
    %338 = vector.shape_cast %337 : vector<1x8x256xf32> to vector<8x256xf32>
    %339 = vector.extract_strided_slice %316 {offsets = [3, 0, 0], sizes = [1, 8, 256], strides = [1, 1, 1]} : vector<8x8x256xf32> to vector<1x8x256xf32>
    %340 = vector.shape_cast %339 : vector<1x8x256xf32> to vector<8x256xf32>
    %341 = arith.select %18, %338, %340 : vector<8x256xi1>, vector<8x256xf32>
    %342 = vector.extract_strided_slice %316 {offsets = [5, 0, 0], sizes = [1, 8, 256], strides = [1, 1, 1]} : vector<8x8x256xf32> to vector<1x8x256xf32>
    %343 = vector.shape_cast %342 : vector<1x8x256xf32> to vector<8x256xf32>
    %344 = vector.extract_strided_slice %316 {offsets = [2, 0, 0], sizes = [1, 8, 256], strides = [1, 1, 1]} : vector<8x8x256xf32> to vector<1x8x256xf32>
    %345 = vector.shape_cast %344 : vector<1x8x256xf32> to vector<8x256xf32>
    %346 = arith.select %18, %343, %345 : vector<8x256xi1>, vector<8x256xf32>
    %347 = vector.extract_strided_slice %316 {offsets = [6, 0, 0], sizes = [1, 8, 256], strides = [1, 1, 1]} : vector<8x8x256xf32> to vector<1x8x256xf32>
    %348 = vector.shape_cast %347 : vector<1x8x256xf32> to vector<8x256xf32>
    %349 = vector.extract_strided_slice %316 {offsets = [1, 0, 0], sizes = [1, 8, 256], strides = [1, 1, 1]} : vector<8x8x256xf32> to vector<1x8x256xf32>
    %350 = vector.shape_cast %349 : vector<1x8x256xf32> to vector<8x256xf32>
    %351 = arith.select %18, %348, %350 : vector<8x256xi1>, vector<8x256xf32>
    %352 = vector.extract_strided_slice %316 {offsets = [7, 0, 0], sizes = [1, 8, 256], strides = [1, 1, 1]} : vector<8x8x256xf32> to vector<1x8x256xf32>
    %353 = vector.shape_cast %352 : vector<1x8x256xf32> to vector<8x256xf32>
    %354 = vector.extract_strided_slice %316 {offsets = [0, 0, 0], sizes = [1, 8, 256], strides = [1, 1, 1]} : vector<8x8x256xf32> to vector<1x8x256xf32>
    %355 = vector.shape_cast %354 : vector<1x8x256xf32> to vector<8x256xf32>
    %356 = arith.select %18, %353, %355 : vector<8x256xi1>, vector<8x256xf32>
    %cst_100 = arith.constant 0.000000e+00 : f32
    %357 = vector.broadcast %cst_100 : f32 to vector<8x64xf32>
    %cst_101 = arith.constant 0.000000e+00 : f32
    %358 = vector.broadcast %cst_101 : f32 to vector<8x64xf32>
    %359 = arith.truncf %357 : vector<8x64xf32> to vector<8x64xbf16>
    %cst_102 = arith.constant dense<0.000000e+00> : vector<8x256xf32>
    %360 = tpu.matmul %359, %310, %cst_102 {dimension_numbers = #tpu.dot_dimension_numbers<[1], [0], [0], [1], [0, 0, 1, 1], [], []>} : vector<8x64xbf16>, vector<64x256xbf16>, vector<8x256xf32> -> vector<8x256xf32>
    %361 = arith.addf %360, %321 : vector<8x256xf32>
    %362 = arith.negf %361 : vector<8x256xf32>
    %363 = math.exp %362 : vector<8x256xf32>
    %cst_103 = arith.constant 1.000000e+00 : f32
    %364 = vector.broadcast %cst_103 : f32 to vector<8x256xf32>
    %365 = arith.addf %364, %363 : vector<8x256xf32>
    %366 = arith.divf %364, %365 : vector<8x256xf32>
    %cst_104 = arith.constant 2.000000e+00 : f32
    %367 = vector.broadcast %cst_104 : f32 to vector<8x256xf32>
    %368 = arith.mulf %367, %366 : vector<8x256xf32>
    %cst_105 = arith.constant 1.000000e+00 : f32
    %369 = vector.broadcast %cst_105 : f32 to vector<8x256xf32>
    %370 = arith.subf %368, %369 : vector<8x256xf32>
    %371 = arith.select %23, %370, %366 : vector<8x256xi1>, vector<8x256xf32>
    %372 = vector.extract_strided_slice %371 {offsets = [0, 0], sizes = [8, 64], strides = [1, 1]} : vector<8x256xf32> to vector<8x64xf32>
    %373 = vector.extract_strided_slice %371 {offsets = [0, 64], sizes = [8, 64], strides = [1, 1]} : vector<8x256xf32> to vector<8x64xf32>
    %374 = vector.extract_strided_slice %371 {offsets = [0, 128], sizes = [8, 64], strides = [1, 1]} : vector<8x256xf32> to vector<8x64xf32>
    %375 = vector.extract_strided_slice %371 {offsets = [0, 192], sizes = [8, 64], strides = [1, 1]} : vector<8x256xf32> to vector<8x64xf32>
    %376 = arith.mulf %373, %358 : vector<8x64xf32>
    %377 = arith.mulf %372, %374 : vector<8x64xf32>
    %378 = arith.addf %376, %377 : vector<8x64xf32>
    %379 = math.tanh %378 : vector<8x64xf32>
    %380 = arith.mulf %375, %379 : vector<8x64xf32>
    %381 = arith.truncf %380 : vector<8x64xf32> to vector<8x64xbf16>
    %cst_106 = arith.constant dense<0.000000e+00> : vector<8x256xf32>
    %382 = tpu.matmul %381, %310, %cst_106 {dimension_numbers = #tpu.dot_dimension_numbers<[1], [0], [0], [1], [0, 0, 1, 1], [], []>} : vector<8x64xbf16>, vector<64x256xbf16>, vector<8x256xf32> -> vector<8x256xf32>
    %383 = arith.addf %382, %326 : vector<8x256xf32>
    %384 = arith.negf %383 : vector<8x256xf32>
    %385 = math.exp %384 : vector<8x256xf32>
    %cst_107 = arith.constant 1.000000e+00 : f32
    %386 = vector.broadcast %cst_107 : f32 to vector<8x256xf32>
    %387 = arith.addf %386, %385 : vector<8x256xf32>
    %388 = arith.divf %386, %387 : vector<8x256xf32>
    %cst_108 = arith.constant 2.000000e+00 : f32
    %389 = vector.broadcast %cst_108 : f32 to vector<8x256xf32>
    %390 = arith.mulf %389, %388 : vector<8x256xf32>
    %cst_109 = arith.constant 1.000000e+00 : f32
    %391 = vector.broadcast %cst_109 : f32 to vector<8x256xf32>
    %392 = arith.subf %390, %391 : vector<8x256xf32>
    %393 = arith.select %23, %392, %388 : vector<8x256xi1>, vector<8x256xf32>
    %394 = vector.extract_strided_slice %393 {offsets = [0, 0], sizes = [8, 64], strides = [1, 1]} : vector<8x256xf32> to vector<8x64xf32>
    %395 = vector.extract_strided_slice %393 {offsets = [0, 64], sizes = [8, 64], strides = [1, 1]} : vector<8x256xf32> to vector<8x64xf32>
    %396 = vector.extract_strided_slice %393 {offsets = [0, 128], sizes = [8, 64], strides = [1, 1]} : vector<8x256xf32> to vector<8x64xf32>
    %397 = vector.extract_strided_slice %393 {offsets = [0, 192], sizes = [8, 64], strides = [1, 1]} : vector<8x256xf32> to vector<8x64xf32>
    %398 = arith.mulf %395, %378 : vector<8x64xf32>
    %399 = arith.mulf %394, %396 : vector<8x64xf32>
    %400 = arith.addf %398, %399 : vector<8x64xf32>
    %401 = math.tanh %400 : vector<8x64xf32>
    %402 = arith.mulf %397, %401 : vector<8x64xf32>
    %403 = arith.truncf %402 : vector<8x64xf32> to vector<8x64xbf16>
    %cst_110 = arith.constant dense<0.000000e+00> : vector<8x256xf32>
    %404 = tpu.matmul %403, %310, %cst_110 {dimension_numbers = #tpu.dot_dimension_numbers<[1], [0], [0], [1], [0, 0, 1, 1], [], []>} : vector<8x64xbf16>, vector<64x256xbf16>, vector<8x256xf32> -> vector<8x256xf32>
    %405 = arith.addf %404, %331 : vector<8x256xf32>
    %406 = arith.negf %405 : vector<8x256xf32>
    %407 = math.exp %406 : vector<8x256xf32>
    %cst_111 = arith.constant 1.000000e+00 : f32
    %408 = vector.broadcast %cst_111 : f32 to vector<8x256xf32>
    %409 = arith.addf %408, %407 : vector<8x256xf32>
    %410 = arith.divf %408, %409 : vector<8x256xf32>
    %cst_112 = arith.constant 2.000000e+00 : f32
    %411 = vector.broadcast %cst_112 : f32 to vector<8x256xf32>
    %412 = arith.mulf %411, %410 : vector<8x256xf32>
    %cst_113 = arith.constant 1.000000e+00 : f32
    %413 = vector.broadcast %cst_113 : f32 to vector<8x256xf32>
    %414 = arith.subf %412, %413 : vector<8x256xf32>
    %415 = arith.select %23, %414, %410 : vector<8x256xi1>, vector<8x256xf32>
    %416 = vector.extract_strided_slice %415 {offsets = [0, 0], sizes = [8, 64], strides = [1, 1]} : vector<8x256xf32> to vector<8x64xf32>
    %417 = vector.extract_strided_slice %415 {offsets = [0, 64], sizes = [8, 64], strides = [1, 1]} : vector<8x256xf32> to vector<8x64xf32>
    %418 = vector.extract_strided_slice %415 {offsets = [0, 128], sizes = [8, 64], strides = [1, 1]} : vector<8x256xf32> to vector<8x64xf32>
    %419 = vector.extract_strided_slice %415 {offsets = [0, 192], sizes = [8, 64], strides = [1, 1]} : vector<8x256xf32> to vector<8x64xf32>
    %420 = arith.mulf %417, %400 : vector<8x64xf32>
    %421 = arith.mulf %416, %418 : vector<8x64xf32>
    %422 = arith.addf %420, %421 : vector<8x64xf32>
    %423 = math.tanh %422 : vector<8x64xf32>
    %424 = arith.mulf %419, %423 : vector<8x64xf32>
    %425 = arith.truncf %424 : vector<8x64xf32> to vector<8x64xbf16>
    %cst_114 = arith.constant dense<0.000000e+00> : vector<8x256xf32>
    %426 = tpu.matmul %425, %310, %cst_114 {dimension_numbers = #tpu.dot_dimension_numbers<[1], [0], [0], [1], [0, 0, 1, 1], [], []>} : vector<8x64xbf16>, vector<64x256xbf16>, vector<8x256xf32> -> vector<8x256xf32>
    %427 = arith.addf %426, %336 : vector<8x256xf32>
    %428 = arith.negf %427 : vector<8x256xf32>
    %429 = math.exp %428 : vector<8x256xf32>
    %cst_115 = arith.constant 1.000000e+00 : f32
    %430 = vector.broadcast %cst_115 : f32 to vector<8x256xf32>
    %431 = arith.addf %430, %429 : vector<8x256xf32>
    %432 = arith.divf %430, %431 : vector<8x256xf32>
    %cst_116 = arith.constant 2.000000e+00 : f32
    %433 = vector.broadcast %cst_116 : f32 to vector<8x256xf32>
    %434 = arith.mulf %433, %432 : vector<8x256xf32>
    %cst_117 = arith.constant 1.000000e+00 : f32
    %435 = vector.broadcast %cst_117 : f32 to vector<8x256xf32>
    %436 = arith.subf %434, %435 : vector<8x256xf32>
    %437 = arith.select %23, %436, %432 : vector<8x256xi1>, vector<8x256xf32>
    %438 = vector.extract_strided_slice %437 {offsets = [0, 0], sizes = [8, 64], strides = [1, 1]} : vector<8x256xf32> to vector<8x64xf32>
    %439 = vector.extract_strided_slice %437 {offsets = [0, 64], sizes = [8, 64], strides = [1, 1]} : vector<8x256xf32> to vector<8x64xf32>
    %440 = vector.extract_strided_slice %437 {offsets = [0, 128], sizes = [8, 64], strides = [1, 1]} : vector<8x256xf32> to vector<8x64xf32>
    %441 = vector.extract_strided_slice %437 {offsets = [0, 192], sizes = [8, 64], strides = [1, 1]} : vector<8x256xf32> to vector<8x64xf32>
    %442 = arith.mulf %439, %422 : vector<8x64xf32>
    %443 = arith.mulf %438, %440 : vector<8x64xf32>
    %444 = arith.addf %442, %443 : vector<8x64xf32>
    %445 = math.tanh %444 : vector<8x64xf32>
    %446 = arith.mulf %441, %445 : vector<8x64xf32>
    %447 = arith.truncf %446 : vector<8x64xf32> to vector<8x64xbf16>
    %cst_118 = arith.constant dense<0.000000e+00> : vector<8x256xf32>
    %448 = tpu.matmul %447, %310, %cst_118 {dimension_numbers = #tpu.dot_dimension_numbers<[1], [0], [0], [1], [0, 0, 1, 1], [], []>} : vector<8x64xbf16>, vector<64x256xbf16>, vector<8x256xf32> -> vector<8x256xf32>
    %449 = arith.addf %448, %341 : vector<8x256xf32>
    %450 = arith.negf %449 : vector<8x256xf32>
    %451 = math.exp %450 : vector<8x256xf32>
    %cst_119 = arith.constant 1.000000e+00 : f32
    %452 = vector.broadcast %cst_119 : f32 to vector<8x256xf32>
    %453 = arith.addf %452, %451 : vector<8x256xf32>
    %454 = arith.divf %452, %453 : vector<8x256xf32>
    %cst_120 = arith.constant 2.000000e+00 : f32
    %455 = vector.broadcast %cst_120 : f32 to vector<8x256xf32>
    %456 = arith.mulf %455, %454 : vector<8x256xf32>
    %cst_121 = arith.constant 1.000000e+00 : f32
    %457 = vector.broadcast %cst_121 : f32 to vector<8x256xf32>
    %458 = arith.subf %456, %457 : vector<8x256xf32>
    %459 = arith.select %23, %458, %454 : vector<8x256xi1>, vector<8x256xf32>
    %460 = vector.extract_strided_slice %459 {offsets = [0, 0], sizes = [8, 64], strides = [1, 1]} : vector<8x256xf32> to vector<8x64xf32>
    %461 = vector.extract_strided_slice %459 {offsets = [0, 64], sizes = [8, 64], strides = [1, 1]} : vector<8x256xf32> to vector<8x64xf32>
    %462 = vector.extract_strided_slice %459 {offsets = [0, 128], sizes = [8, 64], strides = [1, 1]} : vector<8x256xf32> to vector<8x64xf32>
    %463 = vector.extract_strided_slice %459 {offsets = [0, 192], sizes = [8, 64], strides = [1, 1]} : vector<8x256xf32> to vector<8x64xf32>
    %464 = arith.mulf %461, %444 : vector<8x64xf32>
    %465 = arith.mulf %460, %462 : vector<8x64xf32>
    %466 = arith.addf %464, %465 : vector<8x64xf32>
    %467 = math.tanh %466 : vector<8x64xf32>
    %468 = arith.mulf %463, %467 : vector<8x64xf32>
    %469 = arith.truncf %468 : vector<8x64xf32> to vector<8x64xbf16>
    %cst_122 = arith.constant dense<0.000000e+00> : vector<8x256xf32>
    %470 = tpu.matmul %469, %310, %cst_122 {dimension_numbers = #tpu.dot_dimension_numbers<[1], [0], [0], [1], [0, 0, 1, 1], [], []>} : vector<8x64xbf16>, vector<64x256xbf16>, vector<8x256xf32> -> vector<8x256xf32>
    %471 = arith.addf %470, %346 : vector<8x256xf32>
    %472 = arith.negf %471 : vector<8x256xf32>
    %473 = math.exp %472 : vector<8x256xf32>
    %cst_123 = arith.constant 1.000000e+00 : f32
    %474 = vector.broadcast %cst_123 : f32 to vector<8x256xf32>
    %475 = arith.addf %474, %473 : vector<8x256xf32>
    %476 = arith.divf %474, %475 : vector<8x256xf32>
    %cst_124 = arith.constant 2.000000e+00 : f32
    %477 = vector.broadcast %cst_124 : f32 to vector<8x256xf32>
    %478 = arith.mulf %477, %476 : vector<8x256xf32>
    %cst_125 = arith.constant 1.000000e+00 : f32
    %479 = vector.broadcast %cst_125 : f32 to vector<8x256xf32>
    %480 = arith.subf %478, %479 : vector<8x256xf32>
    %481 = arith.select %23, %480, %476 : vector<8x256xi1>, vector<8x256xf32>
    %482 = vector.extract_strided_slice %481 {offsets = [0, 0], sizes = [8, 64], strides = [1, 1]} : vector<8x256xf32> to vector<8x64xf32>
    %483 = vector.extract_strided_slice %481 {offsets = [0, 64], sizes = [8, 64], strides = [1, 1]} : vector<8x256xf32> to vector<8x64xf32>
    %484 = vector.extract_strided_slice %481 {offsets = [0, 128], sizes = [8, 64], strides = [1, 1]} : vector<8x256xf32> to vector<8x64xf32>
    %485 = vector.extract_strided_slice %481 {offsets = [0, 192], sizes = [8, 64], strides = [1, 1]} : vector<8x256xf32> to vector<8x64xf32>
    %486 = arith.mulf %483, %466 : vector<8x64xf32>
    %487 = arith.mulf %482, %484 : vector<8x64xf32>
    %488 = arith.addf %486, %487 : vector<8x64xf32>
    %489 = math.tanh %488 : vector<8x64xf32>
    %490 = arith.mulf %485, %489 : vector<8x64xf32>
    %491 = arith.truncf %490 : vector<8x64xf32> to vector<8x64xbf16>
    %cst_126 = arith.constant dense<0.000000e+00> : vector<8x256xf32>
    %492 = tpu.matmul %491, %310, %cst_126 {dimension_numbers = #tpu.dot_dimension_numbers<[1], [0], [0], [1], [0, 0, 1, 1], [], []>} : vector<8x64xbf16>, vector<64x256xbf16>, vector<8x256xf32> -> vector<8x256xf32>
    %493 = arith.addf %492, %351 : vector<8x256xf32>
    %494 = arith.negf %493 : vector<8x256xf32>
    %495 = math.exp %494 : vector<8x256xf32>
    %cst_127 = arith.constant 1.000000e+00 : f32
    %496 = vector.broadcast %cst_127 : f32 to vector<8x256xf32>
    %497 = arith.addf %496, %495 : vector<8x256xf32>
    %498 = arith.divf %496, %497 : vector<8x256xf32>
    %cst_128 = arith.constant 2.000000e+00 : f32
    %499 = vector.broadcast %cst_128 : f32 to vector<8x256xf32>
    %500 = arith.mulf %499, %498 : vector<8x256xf32>
    %cst_129 = arith.constant 1.000000e+00 : f32
    %501 = vector.broadcast %cst_129 : f32 to vector<8x256xf32>
    %502 = arith.subf %500, %501 : vector<8x256xf32>
    %503 = arith.select %23, %502, %498 : vector<8x256xi1>, vector<8x256xf32>
    %504 = vector.extract_strided_slice %503 {offsets = [0, 0], sizes = [8, 64], strides = [1, 1]} : vector<8x256xf32> to vector<8x64xf32>
    %505 = vector.extract_strided_slice %503 {offsets = [0, 64], sizes = [8, 64], strides = [1, 1]} : vector<8x256xf32> to vector<8x64xf32>
    %506 = vector.extract_strided_slice %503 {offsets = [0, 128], sizes = [8, 64], strides = [1, 1]} : vector<8x256xf32> to vector<8x64xf32>
    %507 = vector.extract_strided_slice %503 {offsets = [0, 192], sizes = [8, 64], strides = [1, 1]} : vector<8x256xf32> to vector<8x64xf32>
    %508 = arith.mulf %505, %488 : vector<8x64xf32>
    %509 = arith.mulf %504, %506 : vector<8x64xf32>
    %510 = arith.addf %508, %509 : vector<8x64xf32>
    %511 = math.tanh %510 : vector<8x64xf32>
    %512 = arith.mulf %507, %511 : vector<8x64xf32>
    %513 = arith.truncf %512 : vector<8x64xf32> to vector<8x64xbf16>
    %cst_130 = arith.constant dense<0.000000e+00> : vector<8x256xf32>
    %514 = tpu.matmul %513, %310, %cst_130 {dimension_numbers = #tpu.dot_dimension_numbers<[1], [0], [0], [1], [0, 0, 1, 1], [], []>} : vector<8x64xbf16>, vector<64x256xbf16>, vector<8x256xf32> -> vector<8x256xf32>
    %515 = arith.addf %514, %356 : vector<8x256xf32>
    %516 = arith.negf %515 : vector<8x256xf32>
    %517 = math.exp %516 : vector<8x256xf32>
    %cst_131 = arith.constant 1.000000e+00 : f32
    %518 = vector.broadcast %cst_131 : f32 to vector<8x256xf32>
    %519 = arith.addf %518, %517 : vector<8x256xf32>
    %520 = arith.divf %518, %519 : vector<8x256xf32>
    %cst_132 = arith.constant 2.000000e+00 : f32
    %521 = vector.broadcast %cst_132 : f32 to vector<8x256xf32>
    %522 = arith.mulf %521, %520 : vector<8x256xf32>
    %cst_133 = arith.constant 1.000000e+00 : f32
    %523 = vector.broadcast %cst_133 : f32 to vector<8x256xf32>
    %524 = arith.subf %522, %523 : vector<8x256xf32>
    %525 = arith.select %23, %524, %520 : vector<8x256xi1>, vector<8x256xf32>
    %526 = vector.extract_strided_slice %525 {offsets = [0, 0], sizes = [8, 64], strides = [1, 1]} : vector<8x256xf32> to vector<8x64xf32>
    %527 = vector.extract_strided_slice %525 {offsets = [0, 64], sizes = [8, 64], strides = [1, 1]} : vector<8x256xf32> to vector<8x64xf32>
    %528 = vector.extract_strided_slice %525 {offsets = [0, 128], sizes = [8, 64], strides = [1, 1]} : vector<8x256xf32> to vector<8x64xf32>
    %529 = vector.extract_strided_slice %525 {offsets = [0, 192], sizes = [8, 64], strides = [1, 1]} : vector<8x256xf32> to vector<8x64xf32>
    %530 = arith.mulf %527, %510 : vector<8x64xf32>
    %531 = arith.mulf %526, %528 : vector<8x64xf32>
    %532 = arith.addf %530, %531 : vector<8x64xf32>
    %533 = math.tanh %532 : vector<8x64xf32>
    %534 = arith.mulf %529, %533 : vector<8x64xf32>
    %535 = arith.select %26, %534, %380 : vector<8x64xi1>, vector<8x64xf32>
    %536 = arith.truncf %535 : vector<8x64xf32> to vector<8x64xbf16>
    %c0_134 = arith.constant 0 : index
    %c0_135 = arith.constant 0 : index
    %537 = vector.load %arg7[%c0_134, %c0_135] : memref<64x4xbf16, #tpu.memory_space<vmem>>, vector<64x4xbf16>
    %cst_136 = arith.constant dense<0.000000e+00> : vector<8x4xf32>
    %538 = tpu.matmul %536, %537, %cst_136 {dimension_numbers = #tpu.dot_dimension_numbers<[1], [0], [0], [1], [0, 0, 1, 1], [], []>} : vector<8x64xbf16>, vector<64x4xbf16>, vector<8x4xf32> -> vector<8x4xf32>
    %c0_137 = arith.constant 0 : index
    %c0_138 = arith.constant 0 : index
    %539 = vector.load %arg8[%c0_137, %c0_138] : memref<1x4xf32, #tpu.memory_space<vmem>>, vector<1x4xf32>
    %540 = vector.broadcast %539 : vector<1x4xf32> to vector<8x4xf32>
    %541 = arith.addf %538, %540 : vector<8x4xf32>
    %c0_139 = arith.constant 0 : index
    %c0_140 = arith.constant 0 : index
    %542 = vector.load %arg9[%c0_139, %c0_140] : memref<8x4xf32, #tpu.memory_space<vmem>>, vector<8x4xf32>
    tpu.vector_store %arg9[%c0_139, %c0_140], %541 {strides = array<i32>} : memref<8x4xf32, #tpu.memory_space<vmem>>, vector<8x4xf32>,
    return
  }
}

</mosaic_0001>

<llo_original>
// kernel: tpu_custom_call.1
$region0: #{tpu_custom_call.1}
  #allocation0 [shape = 'u32[]', space=smem, size = 0x4, offset = 0x4, fixed_abs, tag = 'smem constant byte address 0x4 - core index']
  #allocation1 [shape = 'u32[144,128]{1,0:T(1,128)}', space=vmem, size = 0x12000, scoped, tag = 'internal scratch']
  #allocation2 [shape = 'f32[8,8,64]{2,1,0:T(8,128)}', space=vmem, size = 0x8000, scoped, tag = 'scratch operand']
  #allocation3 [shape = 'f32[8,8,64]{2,1,0:T(8,128)}', space=vmem, size = 0x8000, scoped, tag = 'scratch operand']
  %s0 = inlined_call_operand.hbm [shape: f32[8,8,48], index: 0, kind: input, shape index: {}]
  %s1 = inlined_call_operand.hbm [shape: bf16[48,256], index: 1, kind: input, shape index: {}]
  %s2 = inlined_call_operand.hbm [shape: bf16[64,256], index: 2, kind: input, shape index: {}]
  %s3 = inlined_call_operand.vmem [shape: f32[1,256], index: 3, kind: input, shape index: {}]
  %s4 = inlined_call_operand.hbm [shape: bf16[64,256], index: 4, kind: input, shape index: {}]
  %s5 = inlined_call_operand.hbm [shape: bf16[64,256], index: 5, kind: input, shape index: {}]
  %s6 = inlined_call_operand.vmem [shape: f32[1,256], index: 6, kind: input, shape index: {}]
  %s7 = inlined_call_operand.vmem [shape: bf16[64,4], index: 7, kind: input, shape index: {}]
  %s8 = inlined_call_operand.vmem [shape: f32[1,4], index: 8, kind: input, shape index: {}]
  %s9 = inlined_call_operand.vmem [shape: f32[8,4], index: 9, kind: output, shape index: {}]
  %s10 = sld [smem:[#allocation0]]
  $region66: #{tpu_custom_call.1} parent=0
    _
  %s12 = ssub.s32 1, %s10
  %s13 = scalar_select 0, %s12, %s10
  $region1: #{tpu_custom_call.1} parent=0
    #allocation4 [shape = 'u8[32768]{0}', space=vmem, size = 0x8000, scoped, tag = 'input window, operand 0, single buffered']
    #allocation5 [shape = 's32[1]{0}', space=sflag, size = 0x4, scoped, tag = 'scoped memory for tpu_custom_call.1']
    #allocation6 [shape = 'u8[24576]{0}', space=vmem, size = 0x6000, scoped, tag = 'input window, operand 1, single buffered']
    #allocation7 [shape = 's32[1]{0}', space=sflag, size = 0x4, scoped, tag = 'scoped memory for tpu_custom_call.1']
    #allocation8 [shape = 'u8[32768]{0}', space=vmem, size = 0x8000, scoped, tag = 'input window, operand 2, single buffered']
    #allocation9 [shape = 'u8[32768]{0}', space=vmem, size = 0x8000, scoped, tag = 'input window, operand 4, single buffered']
    #allocation10 [shape = 's32[1]{0}', space=sflag, size = 0x4, scoped, tag = 'scoped memory for tpu_custom_call.1']
    #allocation11 [shape = 'u8[32768]{0}', space=vmem, size = 0x8000, scoped, tag = 'input window, operand 5, single buffered']
    %14 = vsyncpa [#allocation5], 0
    %15 = vsyncpa [#allocation7], 0
    %16 = vsyncpa [#allocation10], 0
    // Predicated region
    $region2: #{tpu_custom_call.1} parent=1 // pred_check
      _
    $region3: #{tpu_custom_call.1} parent=1 // pred_check_branch
      %18 = sbr.rel (0) target = $region5
    $region4: #{tpu_custom_call.1} parent=1 // pred_region
      %s20 = ssub.s32 1024, 1024
      %21 = vsyncadd [#allocation5], %s20
      %s22 = sshll.u32 [#allocation4], 4
      %s23 = int_to_ptr.vmem [resolvable:$true] %s22
      %28 = dma.hbm_to_vmem [thread:$0]  %s0, 1024, %s23, [#allocation5], 128, 128, 8
    $region5: #{tpu_custom_call.1} parent=1 // pred_fallthru
      _
    // Predicated region
    $region6: #{tpu_custom_call.1} parent=1 // pred_check
      _
    $region7: #{tpu_custom_call.1} parent=1 // pred_check_branch
      %30 = sbr.rel (0) target = $region9
    $region8: #{tpu_custom_call.1} parent=1 // pred_region
      %s32 = ssub.s32 768, 768
      %33 = vsyncadd [#allocation7], %s32
      %s34 = sshll.u32 [#allocation6], 4
      %s35 = int_to_ptr.vmem [resolvable:$true] %s34
      %40 = dma.hbm_to_vmem [thread:$0]  %s1, 768, %s35, [#allocation7], 128, 128, 8
    $region9: #{tpu_custom_call.1} parent=1 // pred_fallthru
      _
    // Predicated region
    $region10: #{tpu_custom_call.1} parent=1 // pred_check
      _
    $region11: #{tpu_custom_call.1} parent=1 // pred_check_branch
      %42 = sbr.rel (0) target = $region13
    $region12: #{tpu_custom_call.1} parent=1 // pred_region
      %s44 = ssub.s32 1024, 1024
      %45 = vsyncadd [#allocation7], %s44
      %s46 = sshll.u32 [#allocation8], 4
      %s47 = int_to_ptr.vmem [resolvable:$true] %s46
      %52 = dma.hbm_to_vmem [thread:$0]  %s2, 1024, %s47, [#allocation7], 128, 128, 8
    $region13: #{tpu_custom_call.1} parent=1 // pred_fallthru
      _
    // Predicated region
    $region14: #{tpu_custom_call.1} parent=1 // pred_check
      _
    $region15: #{tpu_custom_call.1} parent=1 // pred_check_branch
      %54 = sbr.rel (0) target = $region17
    $region16: #{tpu_custom_call.1} parent=1 // pred_region
      _
    $region17: #{tpu_custom_call.1} parent=1 // pred_fallthru
      _
    // Predicated region
    $region18: #{tpu_custom_call.1} parent=1 // pred_check
      _
    $region19: #{tpu_custom_call.1} parent=1 // pred_check_branch
      %56 = sbr.rel (0) target = $region21
    $region20: #{tpu_custom_call.1} parent=1 // pred_region
      %s58 = ssub.s32 1024, 1024
      %59 = vsyncadd [#allocation10], %s58
      %s60 = sshll.u32 [#allocation9], 4
      %s61 = int_to_ptr.vmem [resolvable:$true] %s60
      %66 = dma.hbm_to_vmem [thread:$0]  %s4, 1024, %s61, [#allocation10], 128, 128, 8
    $region21: #{tpu_custom_call.1} parent=1 // pred_fallthru
      _
    // Predicated region
    $region22: #{tpu_custom_call.1} parent=1 // pred_check
      _
    $region23: #{tpu_custom_call.1} parent=1 // pred_check_branch
      %68 = sbr.rel (0) target = $region25
    $region24: #{tpu_custom_call.1} parent=1 // pred_region
      %s70 = ssub.s32 1024, 1024
      %71 = vsyncadd [#allocation10], %s70
      %s72 = sshll.u32 [#allocation11], 4
      %s73 = int_to_ptr.vmem [resolvable:$true] %s72
      %78 = dma.hbm_to_vmem [thread:$0]  %s5, 1024, %s73, [#allocation10], 128, 128, 8
    $region25: #{tpu_custom_call.1} parent=1 // pred_fallthru
      _
    // Predicated region
    $region26: #{tpu_custom_call.1} parent=1 // pred_check
      _
    $region27: #{tpu_custom_call.1} parent=1 // pred_check_branch
      %80 = sbr.rel (0) target = $region29
    $region28: #{tpu_custom_call.1} parent=1 // pred_region
      _
    $region29: #{tpu_custom_call.1} parent=1 // pred_fallthru
      _
    // Predicated region
    $region30: #{tpu_custom_call.1} parent=1 // pred_check
      _
    $region31: #{tpu_custom_call.1} parent=1 // pred_check_branch
      %82 = sbr.rel (0) target = $region33
    $region32: #{tpu_custom_call.1} parent=1 // pred_region
      _
    $region33: #{tpu_custom_call.1} parent=1 // pred_fallthru
      _
    // Predicated region
    $region34: #{tpu_custom_call.1} parent=1 // pred_check
      _
    $region35: #{tpu_custom_call.1} parent=1 // pred_check_branch
      %84 = sbr.rel (0) target = $region37
    $region36: #{tpu_custom_call.1} parent=1 // pred_region
      _
    $region37: #{tpu_custom_call.1} parent=1 // pred_fallthru
      _
    // Predicated region
    $region38: #{tpu_custom_call.1} parent=1 // pred_check
      _
    $region39: #{tpu_custom_call.1} parent=1 // pred_check_branch
      %86 = sbr.rel (0) target = $region41
    $region40: #{tpu_custom_call.1} parent=1 // pred_region
      %87 = dma.done [#allocation5], 1024
    $region41: #{tpu_custom_call.1} parent=1 // pred_fallthru
      _
    // Predicated region
    $region42: #{tpu_custom_call.1} parent=1 // pred_check
      _
    $region43: #{tpu_custom_call.1} parent=1 // pred_check_branch
      %89 = sbr.rel (0) target = $region45
    $region44: #{tpu_custom_call.1} parent=1 // pred_region
      %90 = dma.done [#allocation7], 768
    $region45: #{tpu_custom_call.1} parent=1 // pred_fallthru
      _
    // Predicated region
    $region46: #{tpu_custom_call.1} parent=1 // pred_check
      _
    $region47: #{tpu_custom_call.1} parent=1 // pred_check_branch
      %92 = sbr.rel (0) target = $region49
    $region48: #{tpu_custom_call.1} parent=1 // pred_region
      %93 = dma.done [#allocation7], 1024
    $region49: #{tpu_custom_call.1} parent=1 // pred_fallthru
      _
    // Predicated region
    $region50: #{tpu_custom_call.1} parent=1 // pred_check
      _
    $region51: #{tpu_custom_call.1} parent=1 // pred_check_branch
      %95 = sbr.rel (0) target = $region53
    $region52: #{tpu_custom_call.1} parent=1 // pred_region
      %96 = dma.done [#allocation10], 1024
    $region53: #{tpu_custom_call.1} parent=1 // pred_fallthru
      _
    // Predicated region
    $region54: #{tpu_custom_call.1} parent=1 // pred_check
      _
    $region55: #{tpu_custom_call.1} parent=1 // pred_check_branch
      %98 = sbr.rel (0) target = $region57
    $region56: #{tpu_custom_call.1} parent=1 // pred_region
      %99 = dma.done [#allocation10], 1024
    $region57: #{tpu_custom_call.1} parent=1 // pred_fallthru
      _
    %v101 = vlaneseq
    %v102 = vand.u32 %v101, 127
    %v103 = vadd.s32 %v102, 128
    %vm104 = vcmp.lt.s32.totalorder %v102, 0
    %v105 = vsub.s32 0, %v102
    %v106 = vsel %vm104, %v105, %v102
    %v107 = vshrl.u32 %v106, 6
    %v108 = vand.u32 %v106, 63
    %v109 = vsub.s32 0, %v108
    %v110 = vsel %vm104, %v109, %v108
    %vm111 = vcmp.lt.s32.totalorder %v103, 0
    %v112 = vsub.s32 0, %v103
    %v113 = vsel %vm111, %v112, %v103
    %v114 = vshrl.u32 %v113, 6
    %v115 = vand.u32 %v113, 63
    %v116 = vsub.s32 0, %v115
    %v117 = vsel %vm111, %v116, %v115
    %vm118 = vcmp.ne.s32.totalorder %v110, 0
    %vm119 = vcmp.ne.s32.totalorder %v117, 0
    %vm120 = vcmp.lt.s32.totalorder %v110, 0
    %vm121 = vcmp.lt.s32.totalorder %v117, 0
    %vm122 = vmand %vm120, %vm118
    %vm123 = vmand %vm121, %vm119
    %v124 = vadd.s32 %v110, 64
    %v125 = vadd.s32 %v117, 64
    %v126 = vsel %vm122, %v124, %v110
    %v127 = vsel %vm123, %v125, %v117
    %vm128 = vcmp.lt.s32.totalorder %v126, 32
    %vm129 = vcmp.lt.s32.totalorder %v127, 32
    %vm130 = vcmp.ge.s32.totalorder %v102, 128
    %vm131 = vcmp.ge.s32.totalorder %v103, 128
    %vm132 = vcmp.lt.s32.totalorder %v102, 192
    %vm133 = vcmp.lt.s32.totalorder %v103, 192
    %vm134 = vmand %vm130, %vm132
    %vm135 = vmand %vm131, %vm133
    %vm136 = vcmp.lt.s32.totalorder %v102, 32
    %v137 = vld [vmem:[#allocation4] sm:$0xff]
    %v138 = vld [vmem:[#allocation4 + $0x8] sm:$0xff]
    %v139 = vld [vmem:[#allocation4 + $0x10] sm:$0xff]
    %v140 = vld [vmem:[#allocation4 + $0x18] sm:$0xff]
    %v141 = vld [vmem:[#allocation4 + $0x20] sm:$0xff]
    %v142 = vld [vmem:[#allocation4 + $0x28] sm:$0xff]
    %v143 = vld [vmem:[#allocation4 + $0x30] sm:$0xff]
    %v144 = vld [vmem:[#allocation4 + $0x38] sm:$0xff]
    %v145 = vld [vmem:[#allocation6] sm:$0xff]
    %v146 = vld [vmem:[#allocation6 + $0x8] sm:$0xff]
    %v147 = vld [vmem:[#allocation6 + $0x10] sm:$0xff]
    %v148 = vld [vmem:[#allocation6 + $0x18] sm:$0xff]
    %v149 = vld [vmem:[#allocation6 + $0x20] sm:$0xff]
    %v150 = vld [vmem:[#allocation6 + $0x28] sm:$0xff]
    %v151 = vld [vmem:[#allocation8] sm:$0xff]
    %v152 = vld [vmem:[#allocation8 + $0x8] sm:$0xff]
    %v153 = vld [vmem:[#allocation8 + $0x10] sm:$0xff]
    %v154 = vld [vmem:[#allocation8 + $0x18] sm:$0xff]
    %v155 = vld [vmem:[#allocation8 + $0x20] sm:$0xff]
    %v156 = vld [vmem:[#allocation8 + $0x28] sm:$0xff]
    %v157 = vld [vmem:[#allocation8 + $0x30] sm:$0xff]
    %v158 = vld [vmem:[#allocation8 + $0x38] sm:$0xff]
    %v159 = vld [vmem:[%s3] sm:$0x3]
    %v160 = vpack.c.bf16 %v138, %v137
    %v161 = vpack.c.bf16 %v140, %v139
    %v162 = vpack.c.bf16 %v142, %v141
    %v163 = vpack.c.bf16 %v144, %v143
    %v165 = vlaneseq
    %v166 = vshrl.u32 %v165, 7
    %v167 = vsub.s32 0, %v166
    %v168 = vrot.slane %v159, %v167
    %v169 = vlaneseq
    %v170 = vshrl.u32 %v169, 7
    %v171 = vsub.s32 1, %v170
    %v172 = vrot.slane %v159, %v171
    %v181 = vunpack.c.l.b16 %v145
    %v182 = vunpack.c.h.b16 %v145
    %v183 = vunpack.c.l.b16 %v146
    %v184 = vunpack.c.h.b16 %v146
    %v185 = vunpack.c.l.b16 %v147
    %v186 = vunpack.c.h.b16 %v147
    %v187 = vunpack.c.l.b16 %v148
    %v188 = vunpack.c.h.b16 %v148
    %v189 = vunpack.c.l.b16 %v149
    %v190 = vunpack.c.h.b16 %v149
    %v191 = vunpack.c.l.b16 %v150
    %v192 = vunpack.c.h.b16 %v150
    %v193 = vpack.c.b16 %v183, %v181
    %v194 = vpack.c.b16 %v184, %v182
    %v195 = vpack.c.b16 %v187, %v185
    %v196 = vpack.c.b16 %v188, %v186
    %v197 = vpack.c.b16 %v191, %v189
    %v198 = vpack.c.b16 %v192, %v190
    %vm205 = vcmask 392192
    %v207 = vsel %vm205, %v160, 0
    %v210 = vsel %vm205, %v161, 0
    %v213 = vsel %vm205, %v162, 0
    %v216 = vsel %vm205, %v163, 0
    %218 = vmatprep.subr.bf16.mxu0 %v194
    %219 = vmatpush1.bf16.msra.mxu0 %v193
    %220 = vmatprep.subr.bf16.mxu0 %v196
    %221 = vmatpush1.bf16.msra.mxu0 %v195
    %222 = vmatprep.subr.bf16.mxu0 %v198
    %223 = vmatpush1.bf16.msra.mxu0 %v197
    %224 = vmatprep.subr.bf16.mxu0 0
    %225 = vmatpush1.bf16.msra.mxu0 0
    %226 = vmatprep.subr.bf16.mxu0 0
    %227 = vmatpush1.bf16.msra.mxu0 0
    %228 = vmatprep.subr.bf16.mxu0 0
    %229 = vmatpush1.bf16.msra.mxu0 0
    %230 = vmatprep.subr.bf16.mxu0 0
    %231 = vmatpush1.bf16.msra.mxu0 0
    %232 = vmatprep.subr.bf16.mxu0 0
    %233 = vmatpush1.bf16.msra.mxu0 0
    %234 = vmatprep.subr.bf16.mxu0 0
    %235 = vmatpush1.bf16.msra.mxu0 0
    %236 = vmatprep.subr.bf16.mxu0 0
    %237 = vmatpush1.bf16.msra.mxu0 0
    %238 = vmatprep.subr.bf16.mxu0 0
    %239 = vmatpush1.bf16.msra.mxu0 0
    %240 = vmatprep.subr.bf16.mxu0 0
    %241 = vmatpush1.bf16.msra.mxu0 0
    %242 = vmatprep.subr.bf16.mxu0 0
    %243 = vmatpush1.bf16.msra.mxu0 0
    %244 = vmatprep.subr.bf16.mxu0 0
    %245 = vmatpush1.bf16.msra.mxu0 0
    %246 = vmatprep.subr.bf16.mxu0 0
    %247 = vmatpush1.bf16.msra.mxu0 0
    %248 = vmatprep.subr.bf16.mxu0 0
    %249 = vmatpush1.bf16.msra.mxu0 0
    %250 = vmatprep.mubr.bf16.mxu0 0
    %251 = vmatmul.mubr.bf16.gmra.mrb[0].mxu0 %v207
    %v252 = vpop.f32.mrb[0].mxu0
    %v253 = vadd.f32 %v168, %v252
    %v254 = vpop.f32.mrb[0].mxu0
    %v255 = vadd.f32 %v172, %v254
    %v256 = vpop.f32.mrb[0].mxu0
    %v257 = vadd.f32 %v168, %v256
    %v258 = vpop.f32.mrb[0].mxu0
    %v259 = vadd.f32 %v172, %v258
    %260 = vmatprep.mubr.bf16.mxu0 0
    %261 = vmatmul.mubr.bf16.gmra.mrb[0].mxu0 %v210
    %v262 = vpop.f32.mrb[0].mxu0
    %v263 = vadd.f32 %v168, %v262
    %v264 = vpop.f32.mrb[0].mxu0
    %v265 = vadd.f32 %v172, %v264
    %v266 = vpop.f32.mrb[0].mxu0
    %v267 = vadd.f32 %v168, %v266
    %v268 = vpop.f32.mrb[0].mxu0
    %v269 = vadd.f32 %v172, %v268
    %270 = vmatprep.mubr.bf16.mxu0 0
    %271 = vmatmul.mubr.bf16.gmra.mrb[0].mxu0 %v213
    %v272 = vpop.f32.mrb[0].mxu0
    %v273 = vadd.f32 %v168, %v272
    %v274 = vpop.f32.mrb[0].mxu0
    %v275 = vadd.f32 %v172, %v274
    %v276 = vpop.f32.mrb[0].mxu0
    %v277 = vadd.f32 %v168, %v276
    %v278 = vpop.f32.mrb[0].mxu0
    %v279 = vadd.f32 %v172, %v278
    %280 = vmatprep.mubr.bf16.mxu0 0
    %281 = vmatmul.mubr.bf16.gmra.mrb[0].mxu0 %v216
    %v282 = vpop.f32.mrb[0].mxu0
    %v283 = vadd.f32 %v168, %v282
    %v284 = vpop.f32.mrb[0].mxu0
    %v285 = vadd.f32 %v172, %v284
    %v286 = vpop.f32.mrb[0].mxu0
    %v287 = vadd.f32 %v168, %v286
    %v288 = vpop.f32.mrb[0].mxu0
    %v289 = vadd.f32 %v172, %v288
    %290 = vdwg.mxu0
    %v291 = vsel %vm128, %v253, %v287
    %v292 = vsel %vm129, %v255, %v289
    %v293 = vsel %vm128, %v257, %v283
    %v294 = vsel %vm129, %v259, %v285
    %v295 = vsel %vm128, %v263, %v277
    %v296 = vsel %vm129, %v265, %v279
    %v297 = vsel %vm128, %v267, %v273
    %v298 = vsel %vm129, %v269, %v275
    %v299 = vsel %vm128, %v273, %v267
    %v300 = vsel %vm129, %v275, %v269
    %v301 = vsel %vm128, %v277, %v263
    %v302 = vsel %vm129, %v279, %v265
    %v303 = vsel %vm128, %v283, %v257
    %v304 = vsel %vm129, %v285, %v259
    %v305 = vsel %vm128, %v287, %v253
    %v306 = vsel %vm129, %v289, %v255
    %v315 = vunpack.c.l.b16 %v151
    %v316 = vunpack.c.h.b16 %v151
    %v317 = vunpack.c.l.b16 %v152
    %v318 = vunpack.c.h.b16 %v152
    %v319 = vunpack.c.l.b16 %v153
    %v320 = vunpack.c.h.b16 %v153
    %v321 = vunpack.c.l.b16 %v154
    %v322 = vunpack.c.h.b16 %v154
    %v323 = vunpack.c.l.b16 %v155
    %v324 = vunpack.c.h.b16 %v155
    %v325 = vunpack.c.l.b16 %v156
    %v326 = vunpack.c.h.b16 %v156
    %v327 = vunpack.c.l.b16 %v157
    %v328 = vunpack.c.h.b16 %v157
    %v329 = vunpack.c.l.b16 %v158
    %v330 = vunpack.c.h.b16 %v158
    %v331 = vpack.c.b16 %v317, %v315
    %v332 = vpack.c.b16 %v318, %v316
    %v333 = vpack.c.b16 %v321, %v319
    %v334 = vpack.c.b16 %v322, %v320
    %v335 = vpack.c.b16 %v325, %v323
    %v336 = vpack.c.b16 %v326, %v324
    %v337 = vpack.c.b16 %v329, %v327
    %v338 = vpack.c.b16 %v330, %v328
    %vm347 = vcmask 523264
    %v349 = vsel %vm347, 0, 0
    %351 = vmatprep.subr.bf16.mxu0 %v332
    %352 = vmatpush1.bf16.msra.mxu0 %v331
    %353 = vmatprep.subr.bf16.mxu0 %v334
    %354 = vmatpush1.bf16.msra.mxu0 %v333
    %355 = vmatprep.subr.bf16.mxu0 %v336
    %356 = vmatpush1.bf16.msra.mxu0 %v335
    %357 = vmatprep.subr.bf16.mxu0 %v338
    %358 = vmatpush1.bf16.msra.mxu0 %v337
    %359 = vmatprep.subr.bf16.mxu0 0
    %360 = vmatpush1.bf16.msra.mxu0 0
    %361 = vmatprep.subr.bf16.mxu0 0
    %362 = vmatpush1.bf16.msra.mxu0 0
    %363 = vmatprep.subr.bf16.mxu0 0
    %364 = vmatpush1.bf16.msra.mxu0 0
    %365 = vmatprep.subr.bf16.mxu0 0
    %366 = vmatpush1.bf16.msra.mxu0 0
    %367 = vmatprep.subr.bf16.mxu0 0
    %368 = vmatpush1.bf16.msra.mxu0 0
    %369 = vmatprep.subr.bf16.mxu0 0
    %370 = vmatpush1.bf16.msra.mxu0 0
    %371 = vmatprep.subr.bf16.mxu0 0
    %372 = vmatpush1.bf16.msra.mxu0 0
    %373 = vmatprep.subr.bf16.mxu0 0
    %374 = vmatpush1.bf16.msra.mxu0 0
    %375 = vmatprep.subr.bf16.mxu0 0
    %376 = vmatpush1.bf16.msra.mxu0 0
    %377 = vmatprep.subr.bf16.mxu0 0
    %378 = vmatpush1.bf16.msra.mxu0 0
    %379 = vmatprep.subr.bf16.mxu0 0
    %380 = vmatpush1.bf16.msra.mxu0 0
    %381 = vmatprep.subr.bf16.mxu0 0
    %382 = vmatpush1.bf16.msra.mxu0 0
    %383 = vmatprep.mubr.bf16.mxu0 0
    %384 = vmatmul.mubr.bf16.gmra.mrb[0].mxu0 %v349
    %v385 = vpop.f32.mrb[0].mxu0
    %v386 = vadd.f32 %v291, %v385
    %v387 = vpop.f32.mrb[0].mxu0
    %v388 = vadd.f32 %v292, %v387
    %v389 = vpop.f32.mrb[0].mxu0
    %v390 = vpop.f32.mrb[0].mxu0
    %391 = vdwg.mxu0
    %v392 = vxor.u32 %v386, 2147483648
    %v393 = vxor.u32 %v388, 2147483648
    %v394 = vmul.f32 %v392, 1.442695
    %v395 = vpow.pop %v394
    %v396 = vmul.f32 %v393, 1.442695
    %v397 = vpow.pop %v396
    %v398 = vadd.f32 %v395, 1.0
    %v399 = vadd.f32 %v397, 1.0
    %v400 = vrcp.pop %v398
    %v401 = vmul.f32 1.0, %v400
    %v402 = vrcp.pop %v399
    %v403 = vmul.f32 1.0, %v402
    %v404 = vmul.f32 %v401, 2.0
    %v405 = vmul.f32 %v403, 2.0
    %v406 = vsub.f32 %v404, 1.0
    %v407 = vsub.f32 %v405, 1.0
    %v408 = vsel %vm134, %v406, %v401
    %v409 = vsel %vm135, %v407, %v403
    %v410 = vmul.f32 %v408, 0.0
    %v411 = vmul.f32 %v408, %v409
    %413 = vrot.lane.b32.xlu0 %v411, 64
    %v414 = vpop.permute.xlu0 %413
    %v416 = vadd.f32 %v410, %v414
    %v417 = vtanh.pop %v416
    %v418 = vmul.f32 %v409, %v417
    %420 = vrot.lane.b32.xlu0 %v418, 64
    %v421 = vpop.permute.xlu0 %420
    %423 = vst.msk [vmem:[#allocation2] sm:$0xff] %vm347, %v421
    %s424 = scalar_lea.vmem [#allocation3], 56
    %425 = vst.msk [vmem:[%s424] sm:$0xff] %vm347, %v421
    %v426 = vpack.c.bf16 %v418, %v418
    %428 = vrot.lane.b32.xlu0 %v426, 64
    %v429 = vpop.permute.xlu0 %428
    %v431 = vsel %vm347, %v429, 0
    %433 = vmatprep.subr.bf16.mxu0 %v332
    %434 = vmatpush1.bf16.msra.mxu0 %v331
    %435 = vmatprep.subr.bf16.mxu0 %v334
    %436 = vmatpush1.bf16.msra.mxu0 %v333
    %437 = vmatprep.subr.bf16.mxu0 %v336
    %438 = vmatpush1.bf16.msra.mxu0 %v335
    %439 = vmatprep.subr.bf16.mxu0 %v338
    %440 = vmatpush1.bf16.msra.mxu0 %v337
    %441 = vmatprep.subr.bf16.mxu0 0
    %442 = vmatpush1.bf16.msra.mxu0 0
    %443 = vmatprep.subr.bf16.mxu0 0
    %444 = vmatpush1.bf16.msra.mxu0 0
    %445 = vmatprep.subr.bf16.mxu0 0
    %446 = vmatpush1.bf16.msra.mxu0 0
    %447 = vmatprep.subr.bf16.mxu0 0
    %448 = vmatpush1.bf16.msra.mxu0 0
    %449 = vmatprep.subr.bf16.mxu0 0
    %450 = vmatpush1.bf16.msra.mxu0 0
    %451 = vmatprep.subr.bf16.mxu0 0
    %452 = vmatpush1.bf16.msra.mxu0 0
    %453 = vmatprep.subr.bf16.mxu0 0
    %454 = vmatpush1.bf16.msra.mxu0 0
    %455 = vmatprep.subr.bf16.mxu0 0
    %456 = vmatpush1.bf16.msra.mxu0 0
    %457 = vmatprep.subr.bf16.mxu0 0
    %458 = vmatpush1.bf16.msra.mxu0 0
    %459 = vmatprep.subr.bf16.mxu0 0
    %460 = vmatpush1.bf16.msra.mxu0 0
    %461 = vmatprep.subr.bf16.mxu0 0
    %462 = vmatpush1.bf16.msra.mxu0 0
    %463 = vmatprep.subr.bf16.mxu0 0
    %464 = vmatpush1.bf16.msra.mxu0 0
    %465 = vmatprep.mubr.bf16.mxu0 0
    %466 = vmatmul.mubr.bf16.gmra.mrb[0].mxu0 %v431
    %v467 = vpop.f32.mrb[0].mxu0
    %v468 = vadd.f32 %v293, %v467
    %v469 = vpop.f32.mrb[0].mxu0
    %v470 = vadd.f32 %v294, %v469
    %v471 = vpop.f32.mrb[0].mxu0
    %v472 = vpop.f32.mrb[0].mxu0
    %473 = vdwg.mxu0
    %v474 = vxor.u32 %v468, 2147483648
    %v475 = vxor.u32 %v470, 2147483648
    %v476 = vmul.f32 %v474, 1.442695
    %v477 = vpow.pop %v476
    %v478 = vmul.f32 %v475, 1.442695
    %v479 = vpow.pop %v478
    %v480 = vadd.f32 %v477, 1.0
    %v481 = vadd.f32 %v479, 1.0
    %v482 = vrcp.pop %v480
    %v483 = vmul.f32 1.0, %v482
    %v484 = vrcp.pop %v481
    %v485 = vmul.f32 1.0, %v484
    %v486 = vmul.f32 %v483, 2.0
    %v487 = vmul.f32 %v485, 2.0
    %v488 = vsub.f32 %v486, 1.0
    %v489 = vsub.f32 %v487, 1.0
    %v490 = vsel %vm134, %v488, %v483
    %v491 = vsel %vm135, %v489, %v485
    %v492 = vmul.f32 %v490, %v416
    %v493 = vmul.f32 %v490, %v491
    %495 = vrot.lane.b32.xlu0 %v493, 64
    %v496 = vpop.permute.xlu0 %495
    %v498 = vadd.f32 %v492, %v496
    %v499 = vtanh.pop %v498
    %v500 = vmul.f32 %v491, %v499
    %502 = vrot.lane.b32.xlu0 %v500, 64
    %v503 = vpop.permute.xlu0 %502
    %s505 = scalar_lea.vmem [#allocation2], 8
    %506 = vst.msk [vmem:[%s505] sm:$0xff] %vm347, %v503
    %s507 = scalar_lea.vmem [#allocation3], 48
    %508 = vst.msk [vmem:[%s507] sm:$0xff] %vm347, %v503
    %v509 = vpack.c.bf16 %v500, %v500
    %511 = vrot.lane.b32.xlu0 %v509, 64
    %v512 = vpop.permute.xlu0 %511
    %v514 = vsel %vm347, %v512, 0
    %516 = vmatprep.subr.bf16.mxu0 %v332
    %517 = vmatpush1.bf16.msra.mxu0 %v331
    %518 = vmatprep.subr.bf16.mxu0 %v334
    %519 = vmatpush1.bf16.msra.mxu0 %v333
    %520 = vmatprep.subr.bf16.mxu0 %v336
    %521 = vmatpush1.bf16.msra.mxu0 %v335
    %522 = vmatprep.subr.bf16.mxu0 %v338
    %523 = vmatpush1.bf16.msra.mxu0 %v337
    %524 = vmatprep.subr.bf16.mxu0 0
    %525 = vmatpush1.bf16.msra.mxu0 0
    %526 = vmatprep.subr.bf16.mxu0 0
    %527 = vmatpush1.bf16.msra.mxu0 0
    %528 = vmatprep.subr.bf16.mxu0 0
    %529 = vmatpush1.bf16.msra.mxu0 0
    %530 = vmatprep.subr.bf16.mxu0 0
    %531 = vmatpush1.bf16.msra.mxu0 0
    %532 = vmatprep.subr.bf16.mxu0 0
    %533 = vmatpush1.bf16.msra.mxu0 0
    %534 = vmatprep.subr.bf16.mxu0 0
    %535 = vmatpush1.bf16.msra.mxu0 0
    %536 = vmatprep.subr.bf16.mxu0 0
    %537 = vmatpush1.bf16.msra.mxu0 0
    %538 = vmatprep.subr.bf16.mxu0 0
    %539 = vmatpush1.bf16.msra.mxu0 0
    %540 = vmatprep.subr.bf16.mxu0 0
    %541 = vmatpush1.bf16.msra.mxu0 0
    %542 = vmatprep.subr.bf16.mxu0 0
    %543 = vmatpush1.bf16.msra.mxu0 0
    %544 = vmatprep.subr.bf16.mxu0 0
    %545 = vmatpush1.bf16.msra.mxu0 0
    %546 = vmatprep.subr.bf16.mxu0 0
    %547 = vmatpush1.bf16.msra.mxu0 0
    %548 = vmatprep.mubr.bf16.mxu0 0
    %549 = vmatmul.mubr.bf16.gmra.mrb[0].mxu0 %v514
    %v550 = vpop.f32.mrb[0].mxu0
    %v551 = vadd.f32 %v295, %v550
    %v552 = vpop.f32.mrb[0].mxu0
    %v553 = vadd.f32 %v296, %v552
    %v554 = vpop.f32.mrb[0].mxu0
    %v555 = vpop.f32.mrb[0].mxu0
    %556 = vdwg.mxu0
    %v557 = vxor.u32 %v551, 2147483648
    %v558 = vxor.u32 %v553, 2147483648
    %v559 = vmul.f32 %v557, 1.442695
    %v560 = vpow.pop %v559
    %v561 = vmul.f32 %v558, 1.442695
    %v562 = vpow.pop %v561
    %v563 = vadd.f32 %v560, 1.0
    %v564 = vadd.f32 %v562, 1.0
    %v565 = vrcp.pop %v563
    %v566 = vmul.f32 1.0, %v565
    %v567 = vrcp.pop %v564
    %v568 = vmul.f32 1.0, %v567
    %v569 = vmul.f32 %v566, 2.0
    %v570 = vmul.f32 %v568, 2.0
    %v571 = vsub.f32 %v569, 1.0
    %v572 = vsub.f32 %v570, 1.0
    %v573 = vsel %vm134, %v571, %v566
    %v574 = vsel %vm135, %v572, %v568
    %v575 = vmul.f32 %v573, %v498
    %v576 = vmul.f32 %v573, %v574
    %578 = vrot.lane.b32.xlu0 %v576, 64
    %v579 = vpop.permute.xlu0 %578
    %v581 = vadd.f32 %v575, %v579
    %v582 = vtanh.pop %v581
    %v583 = vmul.f32 %v574, %v582
    %585 = vrot.lane.b32.xlu0 %v583, 64
    %v586 = vpop.permute.xlu0 %585
    %s588 = scalar_lea.vmem [#allocation2], 16
    %589 = vst.msk [vmem:[%s588] sm:$0xff] %vm347, %v586
    %s590 = scalar_lea.vmem [#allocation3], 40
    %591 = vst.msk [vmem:[%s590] sm:$0xff] %vm347, %v586
    %v592 = vpack.c.bf16 %v583, %v583
    %594 = vrot.lane.b32.xlu0 %v592, 64
    %v595 = vpop.permute.xlu0 %594
    %v597 = vsel %vm347, %v595, 0
    %599 = vmatprep.subr.bf16.mxu0 %v332
    %600 = vmatpush1.bf16.msra.mxu0 %v331
    %601 = vmatprep.subr.bf16.mxu0 %v334
    %602 = vmatpush1.bf16.msra.mxu0 %v333
    %603 = vmatprep.subr.bf16.mxu0 %v336
    %604 = vmatpush1.bf16.msra.mxu0 %v335
    %605 = vmatprep.subr.bf16.mxu0 %v338
    %606 = vmatpush1.bf16.msra.mxu0 %v337
    %607 = vmatprep.subr.bf16.mxu0 0
    %608 = vmatpush1.bf16.msra.mxu0 0
    %609 = vmatprep.subr.bf16.mxu0 0
    %610 = vmatpush1.bf16.msra.mxu0 0
    %611 = vmatprep.subr.bf16.mxu0 0
    %612 = vmatpush1.bf16.msra.mxu0 0
    %613 = vmatprep.subr.bf16.mxu0 0
    %614 = vmatpush1.bf16.msra.mxu0 0
    %615 = vmatprep.subr.bf16.mxu0 0
    %616 = vmatpush1.bf16.msra.mxu0 0
    %617 = vmatprep.subr.bf16.mxu0 0
    %618 = vmatpush1.bf16.msra.mxu0 0
    %619 = vmatprep.subr.bf16.mxu0 0
    %620 = vmatpush1.bf16.msra.mxu0 0
    %621 = vmatprep.subr.bf16.mxu0 0
    %622 = vmatpush1.bf16.msra.mxu0 0
    %623 = vmatprep.subr.bf16.mxu0 0
    %624 = vmatpush1.bf16.msra.mxu0 0
    %625 = vmatprep.subr.bf16.mxu0 0
    %626 = vmatpush1.bf16.msra.mxu0 0
    %627 = vmatprep.subr.bf16.mxu0 0
    %628 = vmatpush1.bf16.msra.mxu0 0
    %629 = vmatprep.subr.bf16.mxu0 0
    %630 = vmatpush1.bf16.msra.mxu0 0
    %631 = vmatprep.mubr.bf16.mxu0 0
    %632 = vmatmul.mubr.bf16.gmra.mrb[0].mxu0 %v597
    %v633 = vpop.f32.mrb[0].mxu0
    %v634 = vadd.f32 %v297, %v633
    %v635 = vpop.f32.mrb[0].mxu0
    %v636 = vadd.f32 %v298, %v635
    %v637 = vpop.f32.mrb[0].mxu0
    %v638 = vpop.f32.mrb[0].mxu0
    %639 = vdwg.mxu0
    %v640 = vxor.u32 %v634, 2147483648
    %v641 = vxor.u32 %v636, 2147483648
    %v642 = vmul.f32 %v640, 1.442695
    %v643 = vpow.pop %v642
    %v644 = vmul.f32 %v641, 1.442695
    %v645 = vpow.pop %v644
    %v646 = vadd.f32 %v643, 1.0
    %v647 = vadd.f32 %v645, 1.0
    %v648 = vrcp.pop %v646
    %v649 = vmul.f32 1.0, %v648
    %v650 = vrcp.pop %v647
    %v651 = vmul.f32 1.0, %v650
    %v652 = vmul.f32 %v649, 2.0
    %v653 = vmul.f32 %v651, 2.0
    %v654 = vsub.f32 %v652, 1.0
    %v655 = vsub.f32 %v653, 1.0
    %v656 = vsel %vm134, %v654, %v649
    %v657 = vsel %vm135, %v655, %v651
    %v658 = vmul.f32 %v656, %v581
    %v659 = vmul.f32 %v656, %v657
    %661 = vrot.lane.b32.xlu0 %v659, 64
    %v662 = vpop.permute.xlu0 %661
    %v664 = vadd.f32 %v658, %v662
    %v665 = vtanh.pop %v664
    %v666 = vmul.f32 %v657, %v665
    %668 = vrot.lane.b32.xlu0 %v666, 64
    %v669 = vpop.permute.xlu0 %668
    %s671 = scalar_lea.vmem [#allocation2], 24
    %672 = vst.msk [vmem:[%s671] sm:$0xff] %vm347, %v669
    %s673 = scalar_lea.vmem [#allocation3], 32
    %674 = vst.msk [vmem:[%s673] sm:$0xff] %vm347, %v669
    %v675 = vpack.c.bf16 %v666, %v666
    %677 = vrot.lane.b32.xlu0 %v675, 64
    %v678 = vpop.permute.xlu0 %677
    %v680 = vsel %vm347, %v678, 0
    %682 = vmatprep.subr.bf16.mxu0 %v332
    %683 = vmatpush1.bf16.msra.mxu0 %v331
    %684 = vmatprep.subr.bf16.mxu0 %v334
    %685 = vmatpush1.bf16.msra.mxu0 %v333
    %686 = vmatprep.subr.bf16.mxu0 %v336
    %687 = vmatpush1.bf16.msra.mxu0 %v335
    %688 = vmatprep.subr.bf16.mxu0 %v338
    %689 = vmatpush1.bf16.msra.mxu0 %v337
    %690 = vmatprep.subr.bf16.mxu0 0
    %691 = vmatpush1.bf16.msra.mxu0 0
    %692 = vmatprep.subr.bf16.mxu0 0
    %693 = vmatpush1.bf16.msra.mxu0 0
    %694 = vmatprep.subr.bf16.mxu0 0
    %695 = vmatpush1.bf16.msra.mxu0 0
    %696 = vmatprep.subr.bf16.mxu0 0
    %697 = vmatpush1.bf16.msra.mxu0 0
    %698 = vmatprep.subr.bf16.mxu0 0
    %699 = vmatpush1.bf16.msra.mxu0 0
    %700 = vmatprep.subr.bf16.mxu0 0
    %701 = vmatpush1.bf16.msra.mxu0 0
    %702 = vmatprep.subr.bf16.mxu0 0
    %703 = vmatpush1.bf16.msra.mxu0 0
    %704 = vmatprep.subr.bf16.mxu0 0
    %705 = vmatpush1.bf16.msra.mxu0 0
    %706 = vmatprep.subr.bf16.mxu0 0
    %707 = vmatpush1.bf16.msra.mxu0 0
    %708 = vmatprep.subr.bf16.mxu0 0
    %709 = vmatpush1.bf16.msra.mxu0 0
    %710 = vmatprep.subr.bf16.mxu0 0
    %711 = vmatpush1.bf16.msra.mxu0 0
    %712 = vmatprep.subr.bf16.mxu0 0
    %713 = vmatpush1.bf16.msra.mxu0 0
    %714 = vmatprep.mubr.bf16.mxu0 0
    %715 = vmatmul.mubr.bf16.gmra.mrb[0].mxu0 %v680
    %v716 = vpop.f32.mrb[0].mxu0
    %v717 = vadd.f32 %v299, %v716
    %v718 = vpop.f32.mrb[0].mxu0
    %v719 = vadd.f32 %v300, %v718
    %v720 = vpop.f32.mrb[0].mxu0
    %v721 = vpop.f32.mrb[0].mxu0
    %722 = vdwg.mxu0
    %v723 = vxor.u32 %v717, 2147483648
    %v724 = vxor.u32 %v719, 2147483648
    %v725 = vmul.f32 %v723, 1.442695
    %v726 = vpow.pop %v725
    %v727 = vmul.f32 %v724, 1.442695
    %v728 = vpow.pop %v727
    %v729 = vadd.f32 %v726, 1.0
    %v730 = vadd.f32 %v728, 1.0
    %v731 = vrcp.pop %v729
    %v732 = vmul.f32 1.0, %v731
    %v733 = vrcp.pop %v730
    %v734 = vmul.f32 1.0, %v733
    %v735 = vmul.f32 %v732, 2.0
    %v736 = vmul.f32 %v734, 2.0
    %v737 = vsub.f32 %v735, 1.0
    %v738 = vsub.f32 %v736, 1.0
    %v739 = vsel %vm134, %v737, %v732
    %v740 = vsel %vm135, %v738, %v734
    %v741 = vmul.f32 %v739, %v664
    %v742 = vmul.f32 %v739, %v740
    %744 = vrot.lane.b32.xlu0 %v742, 64
    %v745 = vpop.permute.xlu0 %744
    %v747 = vadd.f32 %v741, %v745
    %v748 = vtanh.pop %v747
    %v749 = vmul.f32 %v740, %v748
    %751 = vrot.lane.b32.xlu0 %v749, 64
    %v752 = vpop.permute.xlu0 %751
    %s754 = scalar_lea.vmem [#allocation2], 32
    %755 = vst.msk [vmem:[%s754] sm:$0xff] %vm347, %v752
    %s756 = scalar_lea.vmem [#allocation3], 24
    %757 = vst.msk [vmem:[%s756] sm:$0xff] %vm347, %v752
    %v758 = vpack.c.bf16 %v749, %v749
    %760 = vrot.lane.b32.xlu0 %v758, 64
    %v761 = vpop.permute.xlu0 %760
    %v763 = vsel %vm347, %v761, 0
    %765 = vmatprep.subr.bf16.mxu0 %v332
    %766 = vmatpush1.bf16.msra.mxu0 %v331
    %767 = vmatprep.subr.bf16.mxu0 %v334
    %768 = vmatpush1.bf16.msra.mxu0 %v333
    %769 = vmatprep.subr.bf16.mxu0 %v336
    %770 = vmatpush1.bf16.msra.mxu0 %v335
    %771 = vmatprep.subr.bf16.mxu0 %v338
    %772 = vmatpush1.bf16.msra.mxu0 %v337
    %773 = vmatprep.subr.bf16.mxu0 0
    %774 = vmatpush1.bf16.msra.mxu0 0
    %775 = vmatprep.subr.bf16.mxu0 0
    %776 = vmatpush1.bf16.msra.mxu0 0
    %777 = vmatprep.subr.bf16.mxu0 0
    %778 = vmatpush1.bf16.msra.mxu0 0
    %779 = vmatprep.subr.bf16.mxu0 0
    %780 = vmatpush1.bf16.msra.mxu0 0
    %781 = vmatprep.subr.bf16.mxu0 0
    %782 = vmatpush1.bf16.msra.mxu0 0
    %783 = vmatprep.subr.bf16.mxu0 0
    %784 = vmatpush1.bf16.msra.mxu0 0
    %785 = vmatprep.subr.bf16.mxu0 0
    %786 = vmatpush1.bf16.msra.mxu0 0
    %787 = vmatprep.subr.bf16.mxu0 0
    %788 = vmatpush1.bf16.msra.mxu0 0
    %789 = vmatprep.subr.bf16.mxu0 0
    %790 = vmatpush1.bf16.msra.mxu0 0
    %791 = vmatprep.subr.bf16.mxu0 0
    %792 = vmatpush1.bf16.msra.mxu0 0
    %793 = vmatprep.subr.bf16.mxu0 0
    %794 = vmatpush1.bf16.msra.mxu0 0
    %795 = vmatprep.subr.bf16.mxu0 0
    %796 = vmatpush1.bf16.msra.mxu0 0
    %797 = vmatprep.mubr.bf16.mxu0 0
    %798 = vmatmul.mubr.bf16.gmra.mrb[0].mxu0 %v763
    %v799 = vpop.f32.mrb[0].mxu0
    %v800 = vadd.f32 %v301, %v799
    %v801 = vpop.f32.mrb[0].mxu0
    %v802 = vadd.f32 %v302, %v801
    %v803 = vpop.f32.mrb[0].mxu0
    %v804 = vpop.f32.mrb[0].mxu0
    %805 = vdwg.mxu0
    %v806 = vxor.u32 %v800, 2147483648
    %v807 = vxor.u32 %v802, 2147483648
    %v808 = vmul.f32 %v806, 1.442695
    %v809 = vpow.pop %v808
    %v810 = vmul.f32 %v807, 1.442695
    %v811 = vpow.pop %v810
    %v812 = vadd.f32 %v809, 1.0
    %v813 = vadd.f32 %v811, 1.0
    %v814 = vrcp.pop %v812
    %v815 = vmul.f32 1.0, %v814
    %v816 = vrcp.pop %v813
    %v817 = vmul.f32 1.0, %v816
    %v818 = vmul.f32 %v815, 2.0
    %v819 = vmul.f32 %v817, 2.0
    %v820 = vsub.f32 %v818, 1.0
    %v821 = vsub.f32 %v819, 1.0
    %v822 = vsel %vm134, %v820, %v815
    %v823 = vsel %vm135, %v821, %v817
    %v824 = vmul.f32 %v822, %v747
    %v825 = vmul.f32 %v822, %v823
    %827 = vrot.lane.b32.xlu0 %v825, 64
    %v828 = vpop.permute.xlu0 %827
    %v830 = vadd.f32 %v824, %v828
    %v831 = vtanh.pop %v830
    %v832 = vmul.f32 %v823, %v831
    %834 = vrot.lane.b32.xlu0 %v832, 64
    %v835 = vpop.permute.xlu0 %834
    %s837 = scalar_lea.vmem [#allocation2], 40
    %838 = vst.msk [vmem:[%s837] sm:$0xff] %vm347, %v835
    %s839 = scalar_lea.vmem [#allocation3], 16
    %840 = vst.msk [vmem:[%s839] sm:$0xff] %vm347, %v835
    %v841 = vpack.c.bf16 %v832, %v832
    %843 = vrot.lane.b32.xlu0 %v841, 64
    %v844 = vpop.permute.xlu0 %843
    %v846 = vsel %vm347, %v844, 0
    %848 = vmatprep.subr.bf16.mxu0 %v332
    %849 = vmatpush1.bf16.msra.mxu0 %v331
    %850 = vmatprep.subr.bf16.mxu0 %v334
    %851 = vmatpush1.bf16.msra.mxu0 %v333
    %852 = vmatprep.subr.bf16.mxu0 %v336
    %853 = vmatpush1.bf16.msra.mxu0 %v335
    %854 = vmatprep.subr.bf16.mxu0 %v338
    %855 = vmatpush1.bf16.msra.mxu0 %v337
    %856 = vmatprep.subr.bf16.mxu0 0
    %857 = vmatpush1.bf16.msra.mxu0 0
    %858 = vmatprep.subr.bf16.mxu0 0
    %859 = vmatpush1.bf16.msra.mxu0 0
    %860 = vmatprep.subr.bf16.mxu0 0
    %861 = vmatpush1.bf16.msra.mxu0 0
    %862 = vmatprep.subr.bf16.mxu0 0
    %863 = vmatpush1.bf16.msra.mxu0 0
    %864 = vmatprep.subr.bf16.mxu0 0
    %865 = vmatpush1.bf16.msra.mxu0 0
    %866 = vmatprep.subr.bf16.mxu0 0
    %867 = vmatpush1.bf16.msra.mxu0 0
    %868 = vmatprep.subr.bf16.mxu0 0
    %869 = vmatpush1.bf16.msra.mxu0 0
    %870 = vmatprep.subr.bf16.mxu0 0
    %871 = vmatpush1.bf16.msra.mxu0 0
    %872 = vmatprep.subr.bf16.mxu0 0
    %873 = vmatpush1.bf16.msra.mxu0 0
    %874 = vmatprep.subr.bf16.mxu0 0
    %875 = vmatpush1.bf16.msra.mxu0 0
    %876 = vmatprep.subr.bf16.mxu0 0
    %877 = vmatpush1.bf16.msra.mxu0 0
    %878 = vmatprep.subr.bf16.mxu0 0
    %879 = vmatpush1.bf16.msra.mxu0 0
    %880 = vmatprep.mubr.bf16.mxu0 0
    %881 = vmatmul.mubr.bf16.gmra.mrb[0].mxu0 %v846
    %v882 = vpop.f32.mrb[0].mxu0
    %v883 = vadd.f32 %v303, %v882
    %v884 = vpop.f32.mrb[0].mxu0
    %v885 = vadd.f32 %v304, %v884
    %v886 = vpop.f32.mrb[0].mxu0
    %v887 = vpop.f32.mrb[0].mxu0
    %888 = vdwg.mxu0
    %v889 = vxor.u32 %v883, 2147483648
    %v890 = vxor.u32 %v885, 2147483648
    %v891 = vmul.f32 %v889, 1.442695
    %v892 = vpow.pop %v891
    %v893 = vmul.f32 %v890, 1.442695
    %v894 = vpow.pop %v893
    %v895 = vadd.f32 %v892, 1.0
    %v896 = vadd.f32 %v894, 1.0
    %v897 = vrcp.pop %v895
    %v898 = vmul.f32 1.0, %v897
    %v899 = vrcp.pop %v896
    %v900 = vmul.f32 1.0, %v899
    %v901 = vmul.f32 %v898, 2.0
    %v902 = vmul.f32 %v900, 2.0
    %v903 = vsub.f32 %v901, 1.0
    %v904 = vsub.f32 %v902, 1.0
    %v905 = vsel %vm134, %v903, %v898
    %v906 = vsel %vm135, %v904, %v900
    %v907 = vmul.f32 %v905, %v830
    %v908 = vmul.f32 %v905, %v906
    %910 = vrot.lane.b32.xlu0 %v908, 64
    %v911 = vpop.permute.xlu0 %910
    %v913 = vadd.f32 %v907, %v911
    %v914 = vtanh.pop %v913
    %v915 = vmul.f32 %v906, %v914
    %917 = vrot.lane.b32.xlu0 %v915, 64
    %v918 = vpop.permute.xlu0 %917
    %s920 = scalar_lea.vmem [#allocation2], 48
    %921 = vst.msk [vmem:[%s920] sm:$0xff] %vm347, %v918
    %s922 = scalar_lea.vmem [#allocation3], 8
    %923 = vst.msk [vmem:[%s922] sm:$0xff] %vm347, %v918
    %v924 = vpack.c.bf16 %v915, %v915
    %926 = vrot.lane.b32.xlu0 %v924, 64
    %v927 = vpop.permute.xlu0 %926
    %v929 = vsel %vm347, %v927, 0
    %931 = vmatprep.subr.bf16.mxu0 %v332
    %932 = vmatpush1.bf16.msra.mxu0 %v331
    %933 = vmatprep.subr.bf16.mxu0 %v334
    %934 = vmatpush1.bf16.msra.mxu0 %v333
    %935 = vmatprep.subr.bf16.mxu0 %v336
    %936 = vmatpush1.bf16.msra.mxu0 %v335
    %937 = vmatprep.subr.bf16.mxu0 %v338
    %938 = vmatpush1.bf16.msra.mxu0 %v337
    %939 = vmatprep.subr.bf16.mxu0 0
    %940 = vmatpush1.bf16.msra.mxu0 0
    %941 = vmatprep.subr.bf16.mxu0 0
    %942 = vmatpush1.bf16.msra.mxu0 0
    %943 = vmatprep.subr.bf16.mxu0 0
    %944 = vmatpush1.bf16.msra.mxu0 0
    %945 = vmatprep.subr.bf16.mxu0 0
    %946 = vmatpush1.bf16.msra.mxu0 0
    %947 = vmatprep.subr.bf16.mxu0 0
    %948 = vmatpush1.bf16.msra.mxu0 0
    %949 = vmatprep.subr.bf16.mxu0 0
    %950 = vmatpush1.bf16.msra.mxu0 0
    %951 = vmatprep.subr.bf16.mxu0 0
    %952 = vmatpush1.bf16.msra.mxu0 0
    %953 = vmatprep.subr.bf16.mxu0 0
    %954 = vmatpush1.bf16.msra.mxu0 0
    %955 = vmatprep.subr.bf16.mxu0 0
    %956 = vmatpush1.bf16.msra.mxu0 0
    %957 = vmatprep.subr.bf16.mxu0 0
    %958 = vmatpush1.bf16.msra.mxu0 0
    %959 = vmatprep.subr.bf16.mxu0 0
    %960 = vmatpush1.bf16.msra.mxu0 0
    %961 = vmatprep.subr.bf16.mxu0 0
    %962 = vmatpush1.bf16.msra.mxu0 0
    %963 = vmatprep.mubr.bf16.mxu0 0
    %964 = vmatmul.mubr.bf16.gmra.mrb[0].mxu0 %v929
    %v965 = vpop.f32.mrb[0].mxu0
    %v966 = vadd.f32 %v305, %v965
    %v967 = vpop.f32.mrb[0].mxu0
    %v968 = vadd.f32 %v306, %v967
    %v969 = vpop.f32.mrb[0].mxu0
    %v970 = vpop.f32.mrb[0].mxu0
    %971 = vdwg.mxu0
    %v972 = vxor.u32 %v966, 2147483648
    %v973 = vxor.u32 %v968, 2147483648
    %v974 = vmul.f32 %v972, 1.442695
    %v975 = vpow.pop %v974
    %v976 = vmul.f32 %v973, 1.442695
    %v977 = vpow.pop %v976
    %v978 = vadd.f32 %v975, 1.0
    %v979 = vadd.f32 %v977, 1.0
    %v980 = vrcp.pop %v978
    %v981 = vmul.f32 1.0, %v980
    %v982 = vrcp.pop %v979
    %v983 = vmul.f32 1.0, %v982
    %v984 = vmul.f32 %v981, 2.0
    %v985 = vmul.f32 %v983, 2.0
    %v986 = vsub.f32 %v984, 1.0
    %v987 = vsub.f32 %v985, 1.0
    %v988 = vsel %vm134, %v986, %v981
    %v989 = vsel %vm135, %v987, %v983
    %v990 = vmul.f32 %v988, %v913
    %v991 = vmul.f32 %v988, %v989
    %993 = vrot.lane.b32.xlu0 %v991, 64
    %v994 = vpop.permute.xlu0 %993
    %v996 = vadd.f32 %v990, %v994
    %v997 = vtanh.pop %v996
    %v998 = vmul.f32 %v989, %v997
    %1000 = vrot.lane.b32.xlu0 %v998, 64
    %v1001 = vpop.permute.xlu0 %1000
    %s1003 = scalar_lea.vmem [#allocation2], 56
    %1004 = vst.msk [vmem:[%s1003] sm:$0xff] %vm347, %v1001
    %1005 = vst.msk [vmem:[#allocation3] sm:$0xff] %vm347, %v1001
    %v1006 = vld [vmem:[#allocation2] sm:$0xff]
    %v1007 = vld [vmem:[#allocation2 + $0x8] sm:$0xff]
    %v1008 = vld [vmem:[#allocation2 + $0x10] sm:$0xff]
    %v1009 = vld [vmem:[#allocation2 + $0x18] sm:$0xff]
    %v1010 = vld [vmem:[#allocation2 + $0x20] sm:$0xff]
    %v1011 = vld [vmem:[#allocation2 + $0x28] sm:$0xff]
    %v1012 = vld [vmem:[#allocation2 + $0x30] sm:$0xff]
    %v1013 = vld [vmem:[#allocation2 + $0x38] sm:$0xff]
    %v1014 = vld [vmem:[#allocation3] sm:$0xff]
    %v1015 = vld [vmem:[#allocation3 + $0x8] sm:$0xff]
    %v1016 = vld [vmem:[#allocation3 + $0x10] sm:$0xff]
    %v1017 = vld [vmem:[#allocation3 + $0x18] sm:$0xff]
    %v1018 = vld [vmem:[#allocation3 + $0x20] sm:$0xff]
    %v1019 = vld [vmem:[#allocation3 + $0x28] sm:$0xff]
    %v1020 = vld [vmem:[#allocation3 + $0x30] sm:$0xff]
    %v1021 = vld [vmem:[#allocation3 + $0x38] sm:$0xff]
    %v1022 = vsel %vm136, 1, 0
    %vm1023 = vcmp.eq.s32.totalorder %v1022, 1
    %v1024 = vsel %vm1023, %v1006, %v1014
    %v1025 = vsel %vm1023, %v1007, %v1015
    %v1026 = vsel %vm1023, %v1008, %v1016
    %v1027 = vsel %vm1023, %v1009, %v1017
    %v1028 = vsel %vm1023, %v1010, %v1018
    %v1029 = vsel %vm1023, %v1011, %v1019
    %v1030 = vsel %vm1023, %v1012, %v1020
    %v1031 = vsel %vm1023, %v1013, %v1021
    %v1032 = vld [vmem:[#allocation9] sm:$0xff]
    %v1033 = vld [vmem:[#allocation9 + $0x8] sm:$0xff]
    %v1034 = vld [vmem:[#allocation9 + $0x10] sm:$0xff]
    %v1035 = vld [vmem:[#allocation9 + $0x18] sm:$0xff]
    %v1036 = vld [vmem:[#allocation9 + $0x20] sm:$0xff]
    %v1037 = vld [vmem:[#allocation9 + $0x28] sm:$0xff]
    %v1038 = vld [vmem:[#allocation9 + $0x30] sm:$0xff]
    %v1039 = vld [vmem:[#allocation9 + $0x38] sm:$0xff]
    %v1040 = vld [vmem:[#allocation11] sm:$0xff]
    %v1041 = vld [vmem:[#allocation11 + $0x8] sm:$0xff]
    %v1042 = vld [vmem:[#allocation11 + $0x10] sm:$0xff]
    %v1043 = vld [vmem:[#allocation11 + $0x18] sm:$0xff]
    %v1044 = vld [vmem:[#allocation11 + $0x20] sm:$0xff]
    %v1045 = vld [vmem:[#allocation11 + $0x28] sm:$0xff]
    %v1046 = vld [vmem:[#allocation11 + $0x30] sm:$0xff]
    %v1047 = vld [vmem:[#allocation11 + $0x38] sm:$0xff]
    %v1048 = vld [vmem:[%s6] sm:$0x3]
    %v1049 = vpack.c.bf16 %v1025, %v1024
    %v1050 = vpack.c.bf16 %v1027, %v1026
    %v1051 = vpack.c.bf16 %v1029, %v1028
    %v1052 = vpack.c.bf16 %v1031, %v1030
    %v1054 = vlaneseq
    %v1055 = vshrl.u32 %v1054, 7
    %v1056 = vsub.s32 0, %v1055
    %v1057 = vrot.slane %v1048, %v1056
    %v1058 = vlaneseq
    %v1059 = vshrl.u32 %v1058, 7
    %v1060 = vsub.s32 1, %v1059
    %v1061 = vrot.slane %v1048, %v1060
    %v1072 = vunpack.c.l.b16 %v1032
    %v1073 = vunpack.c.h.b16 %v1032
    %v1074 = vunpack.c.l.b16 %v1033
    %v1075 = vunpack.c.h.b16 %v1033
    %v1076 = vunpack.c.l.b16 %v1034
    %v1077 = vunpack.c.h.b16 %v1034
    %v1078 = vunpack.c.l.b16 %v1035
    %v1079 = vunpack.c.h.b16 %v1035
    %v1080 = vunpack.c.l.b16 %v1036
    %v1081 = vunpack.c.h.b16 %v1036
    %v1082 = vunpack.c.l.b16 %v1037
    %v1083 = vunpack.c.h.b16 %v1037
    %v1084 = vunpack.c.l.b16 %v1038
    %v1085 = vunpack.c.h.b16 %v1038
    %v1086 = vunpack.c.l.b16 %v1039
    %v1087 = vunpack.c.h.b16 %v1039
    %v1088 = vpack.c.b16 %v1074, %v1072
    %v1089 = vpack.c.b16 %v1075, %v1073
    %v1090 = vpack.c.b16 %v1078, %v1076
    %v1091 = vpack.c.b16 %v1079, %v1077
    %v1092 = vpack.c.b16 %v1082, %v1080
    %v1093 = vpack.c.b16 %v1083, %v1081
    %v1094 = vpack.c.b16 %v1086, %v1084
    %v1095 = vpack.c.b16 %v1087, %v1085
    %v1105 = vsel %vm347, %v1049, 0
    %v1108 = vsel %vm347, %v1050, 0
    %v1111 = vsel %vm347, %v1051, 0
    %v1114 = vsel %vm347, %v1052, 0
    %1116 = vmatprep.subr.bf16.mxu0 %v1089
    %1117 = vmatpush1.bf16.msra.mxu0 %v1088
    %1118 = vmatprep.subr.bf16.mxu0 %v1091
    %1119 = vmatpush1.bf16.msra.mxu0 %v1090
    %1120 = vmatprep.subr.bf16.mxu0 %v1093
    %1121 = vmatpush1.bf16.msra.mxu0 %v1092
    %1122 = vmatprep.subr.bf16.mxu0 %v1095
    %1123 = vmatpush1.bf16.msra.mxu0 %v1094
    %1124 = vmatprep.subr.bf16.mxu0 0
    %1125 = vmatpush1.bf16.msra.mxu0 0
    %1126 = vmatprep.subr.bf16.mxu0 0
    %1127 = vmatpush1.bf16.msra.mxu0 0
    %1128 = vmatprep.subr.bf16.mxu0 0
    %1129 = vmatpush1.bf16.msra.mxu0 0
    %1130 = vmatprep.subr.bf16.mxu0 0
    %1131 = vmatpush1.bf16.msra.mxu0 0
    %1132 = vmatprep.subr.bf16.mxu0 0
    %1133 = vmatpush1.bf16.msra.mxu0 0
    %1134 = vmatprep.subr.bf16.mxu0 0
    %1135 = vmatpush1.bf16.msra.mxu0 0
    %1136 = vmatprep.subr.bf16.mxu0 0
    %1137 = vmatpush1.bf16.msra.mxu0 0
    %1138 = vmatprep.subr.bf16.mxu0 0
    %1139 = vmatpush1.bf16.msra.mxu0 0
    %1140 = vmatprep.subr.bf16.mxu0 0
    %1141 = vmatpush1.bf16.msra.mxu0 0
    %1142 = vmatprep.subr.bf16.mxu0 0
    %1143 = vmatpush1.bf16.msra.mxu0 0
    %1144 = vmatprep.subr.bf16.mxu0 0
    %1145 = vmatpush1.bf16.msra.mxu0 0
    %1146 = vmatprep.subr.bf16.mxu0 0
    %1147 = vmatpush1.bf16.msra.mxu0 0
    %1148 = vmatprep.mubr.bf16.mxu0 0
    %1149 = vmatmul.mubr.bf16.gmra.mrb[0].mxu0 %v1105
    %v1150 = vpop.f32.mrb[0].mxu0
    %v1151 = vadd.f32 %v1057, %v1150
    %v1152 = vpop.f32.mrb[0].mxu0
    %v1153 = vadd.f32 %v1061, %v1152
    %v1154 = vpop.f32.mrb[0].mxu0
    %v1155 = vadd.f32 %v1057, %v1154
    %v1156 = vpop.f32.mrb[0].mxu0
    %v1157 = vadd.f32 %v1061, %v1156
    %1158 = vmatprep.mubr.bf16.mxu0 0
    %1159 = vmatmul.mubr.bf16.gmra.mrb[0].mxu0 %v1108
    %v1160 = vpop.f32.mrb[0].mxu0
    %v1161 = vadd.f32 %v1057, %v1160
    %v1162 = vpop.f32.mrb[0].mxu0
    %v1163 = vadd.f32 %v1061, %v1162
    %v1164 = vpop.f32.mrb[0].mxu0
    %v1165 = vadd.f32 %v1057, %v1164
    %v1166 = vpop.f32.mrb[0].mxu0
    %v1167 = vadd.f32 %v1061, %v1166
    %1168 = vmatprep.mubr.bf16.mxu0 0
    %1169 = vmatmul.mubr.bf16.gmra.mrb[0].mxu0 %v1111
    %v1170 = vpop.f32.mrb[0].mxu0
    %v1171 = vadd.f32 %v1057, %v1170
    %v1172 = vpop.f32.mrb[0].mxu0
    %v1173 = vadd.f32 %v1061, %v1172
    %v1174 = vpop.f32.mrb[0].mxu0
    %v1175 = vadd.f32 %v1057, %v1174
    %v1176 = vpop.f32.mrb[0].mxu0
    %v1177 = vadd.f32 %v1061, %v1176
    %1178 = vmatprep.mubr.bf16.mxu0 0
    %1179 = vmatmul.mubr.bf16.gmra.mrb[0].mxu0 %v1114
    %v1180 = vpop.f32.mrb[0].mxu0
    %v1181 = vadd.f32 %v1057, %v1180
    %v1182 = vpop.f32.mrb[0].mxu0
    %v1183 = vadd.f32 %v1061, %v1182
    %v1184 = vpop.f32.mrb[0].mxu0
    %v1185 = vadd.f32 %v1057, %v1184
    %v1186 = vpop.f32.mrb[0].mxu0
    %v1187 = vadd.f32 %v1061, %v1186
    %1188 = vdwg.mxu0
    %v1189 = vsel %vm128, %v1151, %v1185
    %v1190 = vsel %vm129, %v1153, %v1187
    %v1191 = vsel %vm128, %v1155, %v1181
    %v1192 = vsel %vm129, %v1157, %v1183
    %v1193 = vsel %vm128, %v1161, %v1175
    %v1194 = vsel %vm129, %v1163, %v1177
    %v1195 = vsel %vm128, %v1165, %v1171
    %v1196 = vsel %vm129, %v1167, %v1173
    %v1197 = vsel %vm128, %v1171, %v1165
    %v1198 = vsel %vm129, %v1173, %v1167
    %v1199 = vsel %vm128, %v1175, %v1161
    %v1200 = vsel %vm129, %v1177, %v1163
    %v1201 = vsel %vm128, %v1181, %v1155
    %v1202 = vsel %vm129, %v1183, %v1157
    %v1203 = vsel %vm128, %v1185, %v1151
    %v1204 = vsel %vm129, %v1187, %v1153
    %v1213 = vunpack.c.l.b16 %v1040
    %v1214 = vunpack.c.h.b16 %v1040
    %v1215 = vunpack.c.l.b16 %v1041
    %v1216 = vunpack.c.h.b16 %v1041
    %v1217 = vunpack.c.l.b16 %v1042
    %v1218 = vunpack.c.h.b16 %v1042
    %v1219 = vunpack.c.l.b16 %v1043
    %v1220 = vunpack.c.h.b16 %v1043
    %v1221 = vunpack.c.l.b16 %v1044
    %v1222 = vunpack.c.h.b16 %v1044
    %v1223 = vunpack.c.l.b16 %v1045
    %v1224 = vunpack.c.h.b16 %v1045
    %v1225 = vunpack.c.l.b16 %v1046
    %v1226 = vunpack.c.h.b16 %v1046
    %v1227 = vunpack.c.l.b16 %v1047
    %v1228 = vunpack.c.h.b16 %v1047
    %v1229 = vpack.c.b16 %v1215, %v1213
    %v1230 = vpack.c.b16 %v1216, %v1214
    %v1231 = vpack.c.b16 %v1219, %v1217
    %v1232 = vpack.c.b16 %v1220, %v1218
    %v1233 = vpack.c.b16 %v1223, %v1221
    %v1234 = vpack.c.b16 %v1224, %v1222
    %v1235 = vpack.c.b16 %v1227, %v1225
    %v1236 = vpack.c.b16 %v1228, %v1226
    %1245 = vmatprep.subr.bf16.mxu0 %v1230
    %1246 = vmatpush1.bf16.msra.mxu0 %v1229
    %1247 = vmatprep.subr.bf16.mxu0 %v1232
    %1248 = vmatpush1.bf16.msra.mxu0 %v1231
    %1249 = vmatprep.subr.bf16.mxu0 %v1234
    %1250 = vmatpush1.bf16.msra.mxu0 %v1233
    %1251 = vmatprep.subr.bf16.mxu0 %v1236
    %1252 = vmatpush1.bf16.msra.mxu0 %v1235
    %1253 = vmatprep.subr.bf16.mxu0 0
    %1254 = vmatpush1.bf16.msra.mxu0 0
    %1255 = vmatprep.subr.bf16.mxu0 0
    %1256 = vmatpush1.bf16.msra.mxu0 0
    %1257 = vmatprep.subr.bf16.mxu0 0
    %1258 = vmatpush1.bf16.msra.mxu0 0
    %1259 = vmatprep.subr.bf16.mxu0 0
    %1260 = vmatpush1.bf16.msra.mxu0 0
    %1261 = vmatprep.subr.bf16.mxu0 0
    %1262 = vmatpush1.bf16.msra.mxu0 0
    %1263 = vmatprep.subr.bf16.mxu0 0
    %1264 = vmatpush1.bf16.msra.mxu0 0
    %1265 = vmatprep.subr.bf16.mxu0 0
    %1266 = vmatpush1.bf16.msra.mxu0 0
    %1267 = vmatprep.subr.bf16.mxu0 0
    %1268 = vmatpush1.bf16.msra.mxu0 0
    %1269 = vmatprep.subr.bf16.mxu0 0
    %1270 = vmatpush1.bf16.msra.mxu0 0
    %1271 = vmatprep.subr.bf16.mxu0 0
    %1272 = vmatpush1.bf16.msra.mxu0 0
    %1273 = vmatprep.subr.bf16.mxu0 0
    %1274 = vmatpush1.bf16.msra.mxu0 0
    %1275 = vmatprep.subr.bf16.mxu0 0
    %1276 = vmatpush1.bf16.msra.mxu0 0
    %1277 = vmatprep.mubr.bf16.mxu0 0
    %1278 = vmatmul.mubr.bf16.gmra.mrb[0].mxu0 %v349
    %v1279 = vpop.f32.mrb[0].mxu0
    %v1280 = vadd.f32 %v1189, %v1279
    %v1281 = vpop.f32.mrb[0].mxu0
    %v1282 = vadd.f32 %v1190, %v1281
    %v1283 = vpop.f32.mrb[0].mxu0
    %v1284 = vpop.f32.mrb[0].mxu0
    %1285 = vdwg.mxu0
    %v1286 = vxor.u32 %v1280, 2147483648
    %v1287 = vxor.u32 %v1282, 2147483648
    %v1288 = vmul.f32 %v1286, 1.442695
    %v1289 = vpow.pop %v1288
    %v1290 = vmul.f32 %v1287, 1.442695
    %v1291 = vpow.pop %v1290
    %v1292 = vadd.f32 %v1289, 1.0
    %v1293 = vadd.f32 %v1291, 1.0
    %v1294 = vrcp.pop %v1292
    %v1295 = vmul.f32 1.0, %v1294
    %v1296 = vrcp.pop %v1293
    %v1297 = vmul.f32 1.0, %v1296
    %v1298 = vmul.f32 %v1295, 2.0
    %v1299 = vmul.f32 %v1297, 2.0
    %v1300 = vsub.f32 %v1298, 1.0
    %v1301 = vsub.f32 %v1299, 1.0
    %v1302 = vsel %vm134, %v1300, %v1295
    %v1303 = vsel %vm135, %v1301, %v1297
    %v1304 = vmul.f32 %v1302, 0.0
    %v1305 = vmul.f32 %v1302, %v1303
    %1307 = vrot.lane.b32.xlu0 %v1305, 64
    %v1308 = vpop.permute.xlu0 %1307
    %v1310 = vadd.f32 %v1304, %v1308
    %v1311 = vtanh.pop %v1310
    %v1312 = vmul.f32 %v1303, %v1311
    %v1313 = vpack.c.bf16 %v1312, %v1312
    %1315 = vrot.lane.b32.xlu0 %v1313, 64
    %v1316 = vpop.permute.xlu0 %1315
    %v1318 = vsel %vm347, %v1316, 0
    %1320 = vmatprep.subr.bf16.mxu0 %v1230
    %1321 = vmatpush1.bf16.msra.mxu0 %v1229
    %1322 = vmatprep.subr.bf16.mxu0 %v1232
    %1323 = vmatpush1.bf16.msra.mxu0 %v1231
    %1324 = vmatprep.subr.bf16.mxu0 %v1234
    %1325 = vmatpush1.bf16.msra.mxu0 %v1233
    %1326 = vmatprep.subr.bf16.mxu0 %v1236
    %1327 = vmatpush1.bf16.msra.mxu0 %v1235
    %1328 = vmatprep.subr.bf16.mxu0 0
    %1329 = vmatpush1.bf16.msra.mxu0 0
    %1330 = vmatprep.subr.bf16.mxu0 0
    %1331 = vmatpush1.bf16.msra.mxu0 0
    %1332 = vmatprep.subr.bf16.mxu0 0
    %1333 = vmatpush1.bf16.msra.mxu0 0
    %1334 = vmatprep.subr.bf16.mxu0 0
    %1335 = vmatpush1.bf16.msra.mxu0 0
    %1336 = vmatprep.subr.bf16.mxu0 0
    %1337 = vmatpush1.bf16.msra.mxu0 0
    %1338 = vmatprep.subr.bf16.mxu0 0
    %1339 = vmatpush1.bf16.msra.mxu0 0
    %1340 = vmatprep.subr.bf16.mxu0 0
    %1341 = vmatpush1.bf16.msra.mxu0 0
    %1342 = vmatprep.subr.bf16.mxu0 0
    %1343 = vmatpush1.bf16.msra.mxu0 0
    %1344 = vmatprep.subr.bf16.mxu0 0
    %1345 = vmatpush1.bf16.msra.mxu0 0
    %1346 = vmatprep.subr.bf16.mxu0 0
    %1347 = vmatpush1.bf16.msra.mxu0 0
    %1348 = vmatprep.subr.bf16.mxu0 0
    %1349 = vmatpush1.bf16.msra.mxu0 0
    %1350 = vmatprep.subr.bf16.mxu0 0
    %1351 = vmatpush1.bf16.msra.mxu0 0
    %1352 = vmatprep.mubr.bf16.mxu0 0
    %1353 = vmatmul.mubr.bf16.gmra.mrb[0].mxu0 %v1318
    %v1354 = vpop.f32.mrb[0].mxu0
    %v1355 = vadd.f32 %v1191, %v1354
    %v1356 = vpop.f32.mrb[0].mxu0
    %v1357 = vadd.f32 %v1192, %v1356
    %v1358 = vpop.f32.mrb[0].mxu0
    %v1359 = vpop.f32.mrb[0].mxu0
    %1360 = vdwg.mxu0
    %v1361 = vxor.u32 %v1355, 2147483648
    %v1362 = vxor.u32 %v1357, 2147483648
    %v1363 = vmul.f32 %v1361, 1.442695
    %v1364 = vpow.pop %v1363
    %v1365 = vmul.f32 %v1362, 1.442695
    %v1366 = vpow.pop %v1365
    %v1367 = vadd.f32 %v1364, 1.0
    %v1368 = vadd.f32 %v1366, 1.0
    %v1369 = vrcp.pop %v1367
    %v1370 = vmul.f32 1.0, %v1369
    %v1371 = vrcp.pop %v1368
    %v1372 = vmul.f32 1.0, %v1371
    %v1373 = vmul.f32 %v1370, 2.0
    %v1374 = vmul.f32 %v1372, 2.0
    %v1375 = vsub.f32 %v1373, 1.0
    %v1376 = vsub.f32 %v1374, 1.0
    %v1377 = vsel %vm134, %v1375, %v1370
    %v1378 = vsel %vm135, %v1376, %v1372
    %v1379 = vmul.f32 %v1377, %v1310
    %v1380 = vmul.f32 %v1377, %v1378
    %1382 = vrot.lane.b32.xlu0 %v1380, 64
    %v1383 = vpop.permute.xlu0 %1382
    %v1385 = vadd.f32 %v1379, %v1383
    %v1386 = vtanh.pop %v1385
    %v1387 = vmul.f32 %v1378, %v1386
    %v1388 = vpack.c.bf16 %v1387, %v1387
    %1390 = vrot.lane.b32.xlu0 %v1388, 64
    %v1391 = vpop.permute.xlu0 %1390
    %v1393 = vsel %vm347, %v1391, 0
    %1395 = vmatprep.subr.bf16.mxu0 %v1230
    %1396 = vmatpush1.bf16.msra.mxu0 %v1229
    %1397 = vmatprep.subr.bf16.mxu0 %v1232
    %1398 = vmatpush1.bf16.msra.mxu0 %v1231
    %1399 = vmatprep.subr.bf16.mxu0 %v1234
    %1400 = vmatpush1.bf16.msra.mxu0 %v1233
    %1401 = vmatprep.subr.bf16.mxu0 %v1236
    %1402 = vmatpush1.bf16.msra.mxu0 %v1235
    %1403 = vmatprep.subr.bf16.mxu0 0
    %1404 = vmatpush1.bf16.msra.mxu0 0
    %1405 = vmatprep.subr.bf16.mxu0 0
    %1406 = vmatpush1.bf16.msra.mxu0 0
    %1407 = vmatprep.subr.bf16.mxu0 0
    %1408 = vmatpush1.bf16.msra.mxu0 0
    %1409 = vmatprep.subr.bf16.mxu0 0
    %1410 = vmatpush1.bf16.msra.mxu0 0
    %1411 = vmatprep.subr.bf16.mxu0 0
    %1412 = vmatpush1.bf16.msra.mxu0 0
    %1413 = vmatprep.subr.bf16.mxu0 0
    %1414 = vmatpush1.bf16.msra.mxu0 0
    %1415 = vmatprep.subr.bf16.mxu0 0
    %1416 = vmatpush1.bf16.msra.mxu0 0
    %1417 = vmatprep.subr.bf16.mxu0 0
    %1418 = vmatpush1.bf16.msra.mxu0 0
    %1419 = vmatprep.subr.bf16.mxu0 0
    %1420 = vmatpush1.bf16.msra.mxu0 0
    %1421 = vmatprep.subr.bf16.mxu0 0
    %1422 = vmatpush1.bf16.msra.mxu0 0
    %1423 = vmatprep.subr.bf16.mxu0 0
    %1424 = vmatpush1.bf16.msra.mxu0 0
    %1425 = vmatprep.subr.bf16.mxu0 0
    %1426 = vmatpush1.bf16.msra.mxu0 0
    %1427 = vmatprep.mubr.bf16.mxu0 0
    %1428 = vmatmul.mubr.bf16.gmra.mrb[0].mxu0 %v1393
    %v1429 = vpop.f32.mrb[0].mxu0
    %v1430 = vadd.f32 %v1193, %v1429
    %v1431 = vpop.f32.mrb[0].mxu0
    %v1432 = vadd.f32 %v1194, %v1431
    %v1433 = vpop.f32.mrb[0].mxu0
    %v1434 = vpop.f32.mrb[0].mxu0
    %1435 = vdwg.mxu0
    %v1436 = vxor.u32 %v1430, 2147483648
    %v1437 = vxor.u32 %v1432, 2147483648
    %v1438 = vmul.f32 %v1436, 1.442695
    %v1439 = vpow.pop %v1438
    %v1440 = vmul.f32 %v1437, 1.442695
    %v1441 = vpow.pop %v1440
    %v1442 = vadd.f32 %v1439, 1.0
    %v1443 = vadd.f32 %v1441, 1.0
    %v1444 = vrcp.pop %v1442
    %v1445 = vmul.f32 1.0, %v1444
    %v1446 = vrcp.pop %v1443
    %v1447 = vmul.f32 1.0, %v1446
    %v1448 = vmul.f32 %v1445, 2.0
    %v1449 = vmul.f32 %v1447, 2.0
    %v1450 = vsub.f32 %v1448, 1.0
    %v1451 = vsub.f32 %v1449, 1.0
    %v1452 = vsel %vm134, %v1450, %v1445
    %v1453 = vsel %vm135, %v1451, %v1447
    %v1454 = vmul.f32 %v1452, %v1385
    %v1455 = vmul.f32 %v1452, %v1453
    %1457 = vrot.lane.b32.xlu0 %v1455, 64
    %v1458 = vpop.permute.xlu0 %1457
    %v1460 = vadd.f32 %v1454, %v1458
    %v1461 = vtanh.pop %v1460
    %v1462 = vmul.f32 %v1453, %v1461
    %v1463 = vpack.c.bf16 %v1462, %v1462
    %1465 = vrot.lane.b32.xlu0 %v1463, 64
    %v1466 = vpop.permute.xlu0 %1465
    %v1468 = vsel %vm347, %v1466, 0
    %1470 = vmatprep.subr.bf16.mxu0 %v1230
    %1471 = vmatpush1.bf16.msra.mxu0 %v1229
    %1472 = vmatprep.subr.bf16.mxu0 %v1232
    %1473 = vmatpush1.bf16.msra.mxu0 %v1231
    %1474 = vmatprep.subr.bf16.mxu0 %v1234
    %1475 = vmatpush1.bf16.msra.mxu0 %v1233
    %1476 = vmatprep.subr.bf16.mxu0 %v1236
    %1477 = vmatpush1.bf16.msra.mxu0 %v1235
    %1478 = vmatprep.subr.bf16.mxu0 0
    %1479 = vmatpush1.bf16.msra.mxu0 0
    %1480 = vmatprep.subr.bf16.mxu0 0
    %1481 = vmatpush1.bf16.msra.mxu0 0
    %1482 = vmatprep.subr.bf16.mxu0 0
    %1483 = vmatpush1.bf16.msra.mxu0 0
    %1484 = vmatprep.subr.bf16.mxu0 0
    %1485 = vmatpush1.bf16.msra.mxu0 0
    %1486 = vmatprep.subr.bf16.mxu0 0
    %1487 = vmatpush1.bf16.msra.mxu0 0
    %1488 = vmatprep.subr.bf16.mxu0 0
    %1489 = vmatpush1.bf16.msra.mxu0 0
    %1490 = vmatprep.subr.bf16.mxu0 0
    %1491 = vmatpush1.bf16.msra.mxu0 0
    %1492 = vmatprep.subr.bf16.mxu0 0
    %1493 = vmatpush1.bf16.msra.mxu0 0
    %1494 = vmatprep.subr.bf16.mxu0 0
    %1495 = vmatpush1.bf16.msra.mxu0 0
    %1496 = vmatprep.subr.bf16.mxu0 0
    %1497 = vmatpush1.bf16.msra.mxu0 0
    %1498 = vmatprep.subr.bf16.mxu0 0
    %1499 = vmatpush1.bf16.msra.mxu0 0
    %1500 = vmatprep.subr.bf16.mxu0 0
    %1501 = vmatpush1.bf16.msra.mxu0 0
    %1502 = vmatprep.mubr.bf16.mxu0 0
    %1503 = vmatmul.mubr.bf16.gmra.mrb[0].mxu0 %v1468
    %v1504 = vpop.f32.mrb[0].mxu0
    %v1505 = vadd.f32 %v1195, %v1504
    %v1506 = vpop.f32.mrb[0].mxu0
    %v1507 = vadd.f32 %v1196, %v1506
    %v1508 = vpop.f32.mrb[0].mxu0
    %v1509 = vpop.f32.mrb[0].mxu0
    %1510 = vdwg.mxu0
    %v1511 = vxor.u32 %v1505, 2147483648
    %v1512 = vxor.u32 %v1507, 2147483648
    %v1513 = vmul.f32 %v1511, 1.442695
    %v1514 = vpow.pop %v1513
    %v1515 = vmul.f32 %v1512, 1.442695
    %v1516 = vpow.pop %v1515
    %v1517 = vadd.f32 %v1514, 1.0
    %v1518 = vadd.f32 %v1516, 1.0
    %v1519 = vrcp.pop %v1517
    %v1520 = vmul.f32 1.0, %v1519
    %v1521 = vrcp.pop %v1518
    %v1522 = vmul.f32 1.0, %v1521
    %v1523 = vmul.f32 %v1520, 2.0
    %v1524 = vmul.f32 %v1522, 2.0
    %v1525 = vsub.f32 %v1523, 1.0
    %v1526 = vsub.f32 %v1524, 1.0
    %v1527 = vsel %vm134, %v1525, %v1520
    %v1528 = vsel %vm135, %v1526, %v1522
    %v1529 = vmul.f32 %v1527, %v1460
    %v1530 = vmul.f32 %v1527, %v1528
    %1532 = vrot.lane.b32.xlu0 %v1530, 64
    %v1533 = vpop.permute.xlu0 %1532
    %v1535 = vadd.f32 %v1529, %v1533
    %v1536 = vtanh.pop %v1535
    %v1537 = vmul.f32 %v1528, %v1536
    %v1538 = vpack.c.bf16 %v1537, %v1537
    %1540 = vrot.lane.b32.xlu0 %v1538, 64
    %v1541 = vpop.permute.xlu0 %1540
    %v1543 = vsel %vm347, %v1541, 0
    %1545 = vmatprep.subr.bf16.mxu0 %v1230
    %1546 = vmatpush1.bf16.msra.mxu0 %v1229
    %1547 = vmatprep.subr.bf16.mxu0 %v1232
    %1548 = vmatpush1.bf16.msra.mxu0 %v1231
    %1549 = vmatprep.subr.bf16.mxu0 %v1234
    %1550 = vmatpush1.bf16.msra.mxu0 %v1233
    %1551 = vmatprep.subr.bf16.mxu0 %v1236
    %1552 = vmatpush1.bf16.msra.mxu0 %v1235
    %1553 = vmatprep.subr.bf16.mxu0 0
    %1554 = vmatpush1.bf16.msra.mxu0 0
    %1555 = vmatprep.subr.bf16.mxu0 0
    %1556 = vmatpush1.bf16.msra.mxu0 0
    %1557 = vmatprep.subr.bf16.mxu0 0
    %1558 = vmatpush1.bf16.msra.mxu0 0
    %1559 = vmatprep.subr.bf16.mxu0 0
    %1560 = vmatpush1.bf16.msra.mxu0 0
    %1561 = vmatprep.subr.bf16.mxu0 0
    %1562 = vmatpush1.bf16.msra.mxu0 0
    %1563 = vmatprep.subr.bf16.mxu0 0
    %1564 = vmatpush1.bf16.msra.mxu0 0
    %1565 = vmatprep.subr.bf16.mxu0 0
    %1566 = vmatpush1.bf16.msra.mxu0 0
    %1567 = vmatprep.subr.bf16.mxu0 0
    %1568 = vmatpush1.bf16.msra.mxu0 0
    %1569 = vmatprep.subr.bf16.mxu0 0
    %1570 = vmatpush1.bf16.msra.mxu0 0
    %1571 = vmatprep.subr.bf16.mxu0 0
    %1572 = vmatpush1.bf16.msra.mxu0 0
    %1573 = vmatprep.subr.bf16.mxu0 0
    %1574 = vmatpush1.bf16.msra.mxu0 0
    %1575 = vmatprep.subr.bf16.mxu0 0
    %1576 = vmatpush1.bf16.msra.mxu0 0
    %1577 = vmatprep.mubr.bf16.mxu0 0
    %1578 = vmatmul.mubr.bf16.gmra.mrb[0].mxu0 %v1543
    %v1579 = vpop.f32.mrb[0].mxu0
    %v1580 = vadd.f32 %v1197, %v1579
    %v1581 = vpop.f32.mrb[0].mxu0
    %v1582 = vadd.f32 %v1198, %v1581
    %v1583 = vpop.f32.mrb[0].mxu0
    %v1584 = vpop.f32.mrb[0].mxu0
    %1585 = vdwg.mxu0
    %v1586 = vxor.u32 %v1580, 2147483648
    %v1587 = vxor.u32 %v1582, 2147483648
    %v1588 = vmul.f32 %v1586, 1.442695
    %v1589 = vpow.pop %v1588
    %v1590 = vmul.f32 %v1587, 1.442695
    %v1591 = vpow.pop %v1590
    %v1592 = vadd.f32 %v1589, 1.0
    %v1593 = vadd.f32 %v1591, 1.0
    %v1594 = vrcp.pop %v1592
    %v1595 = vmul.f32 1.0, %v1594
    %v1596 = vrcp.pop %v1593
    %v1597 = vmul.f32 1.0, %v1596
    %v1598 = vmul.f32 %v1595, 2.0
    %v1599 = vmul.f32 %v1597, 2.0
    %v1600 = vsub.f32 %v1598, 1.0
    %v1601 = vsub.f32 %v1599, 1.0
    %v1602 = vsel %vm134, %v1600, %v1595
    %v1603 = vsel %vm135, %v1601, %v1597
    %v1604 = vmul.f32 %v1602, %v1535
    %v1605 = vmul.f32 %v1602, %v1603
    %1607 = vrot.lane.b32.xlu0 %v1605, 64
    %v1608 = vpop.permute.xlu0 %1607
    %v1610 = vadd.f32 %v1604, %v1608
    %v1611 = vtanh.pop %v1610
    %v1612 = vmul.f32 %v1603, %v1611
    %v1613 = vpack.c.bf16 %v1612, %v1612
    %1615 = vrot.lane.b32.xlu0 %v1613, 64
    %v1616 = vpop.permute.xlu0 %1615
    %v1618 = vsel %vm347, %v1616, 0
    %1620 = vmatprep.subr.bf16.mxu0 %v1230
    %1621 = vmatpush1.bf16.msra.mxu0 %v1229
    %1622 = vmatprep.subr.bf16.mxu0 %v1232
    %1623 = vmatpush1.bf16.msra.mxu0 %v1231
    %1624 = vmatprep.subr.bf16.mxu0 %v1234
    %1625 = vmatpush1.bf16.msra.mxu0 %v1233
    %1626 = vmatprep.subr.bf16.mxu0 %v1236
    %1627 = vmatpush1.bf16.msra.mxu0 %v1235
    %1628 = vmatprep.subr.bf16.mxu0 0
    %1629 = vmatpush1.bf16.msra.mxu0 0
    %1630 = vmatprep.subr.bf16.mxu0 0
    %1631 = vmatpush1.bf16.msra.mxu0 0
    %1632 = vmatprep.subr.bf16.mxu0 0
    %1633 = vmatpush1.bf16.msra.mxu0 0
    %1634 = vmatprep.subr.bf16.mxu0 0
    %1635 = vmatpush1.bf16.msra.mxu0 0
    %1636 = vmatprep.subr.bf16.mxu0 0
    %1637 = vmatpush1.bf16.msra.mxu0 0
    %1638 = vmatprep.subr.bf16.mxu0 0
    %1639 = vmatpush1.bf16.msra.mxu0 0
    %1640 = vmatprep.subr.bf16.mxu0 0
    %1641 = vmatpush1.bf16.msra.mxu0 0
    %1642 = vmatprep.subr.bf16.mxu0 0
    %1643 = vmatpush1.bf16.msra.mxu0 0
    %1644 = vmatprep.subr.bf16.mxu0 0
    %1645 = vmatpush1.bf16.msra.mxu0 0
    %1646 = vmatprep.subr.bf16.mxu0 0
    %1647 = vmatpush1.bf16.msra.mxu0 0
    %1648 = vmatprep.subr.bf16.mxu0 0
    %1649 = vmatpush1.bf16.msra.mxu0 0
    %1650 = vmatprep.subr.bf16.mxu0 0
    %1651 = vmatpush1.bf16.msra.mxu0 0
    %1652 = vmatprep.mubr.bf16.mxu0 0
    %1653 = vmatmul.mubr.bf16.gmra.mrb[0].mxu0 %v1618
    %v1654 = vpop.f32.mrb[0].mxu0
    %v1655 = vadd.f32 %v1199, %v1654
    %v1656 = vpop.f32.mrb[0].mxu0
    %v1657 = vadd.f32 %v1200, %v1656
    %v1658 = vpop.f32.mrb[0].mxu0
    %v1659 = vpop.f32.mrb[0].mxu0
    %1660 = vdwg.mxu0
    %v1661 = vxor.u32 %v1655, 2147483648
    %v1662 = vxor.u32 %v1657, 2147483648
    %v1663 = vmul.f32 %v1661, 1.442695
    %v1664 = vpow.pop %v1663
    %v1665 = vmul.f32 %v1662, 1.442695
    %v1666 = vpow.pop %v1665
    %v1667 = vadd.f32 %v1664, 1.0
    %v1668 = vadd.f32 %v1666, 1.0
    %v1669 = vrcp.pop %v1667
    %v1670 = vmul.f32 1.0, %v1669
    %v1671 = vrcp.pop %v1668
    %v1672 = vmul.f32 1.0, %v1671
    %v1673 = vmul.f32 %v1670, 2.0
    %v1674 = vmul.f32 %v1672, 2.0
    %v1675 = vsub.f32 %v1673, 1.0
    %v1676 = vsub.f32 %v1674, 1.0
    %v1677 = vsel %vm134, %v1675, %v1670
    %v1678 = vsel %vm135, %v1676, %v1672
    %v1679 = vmul.f32 %v1677, %v1610
    %v1680 = vmul.f32 %v1677, %v1678
    %1682 = vrot.lane.b32.xlu0 %v1680, 64
    %v1683 = vpop.permute.xlu0 %1682
    %v1685 = vadd.f32 %v1679, %v1683
    %v1686 = vtanh.pop %v1685
    %v1687 = vmul.f32 %v1678, %v1686
    %v1688 = vpack.c.bf16 %v1687, %v1687
    %1690 = vrot.lane.b32.xlu0 %v1688, 64
    %v1691 = vpop.permute.xlu0 %1690
    %v1693 = vsel %vm347, %v1691, 0
    %1695 = vmatprep.subr.bf16.mxu0 %v1230
    %1696 = vmatpush1.bf16.msra.mxu0 %v1229
    %1697 = vmatprep.subr.bf16.mxu0 %v1232
    %1698 = vmatpush1.bf16.msra.mxu0 %v1231
    %1699 = vmatprep.subr.bf16.mxu0 %v1234
    %1700 = vmatpush1.bf16.msra.mxu0 %v1233
    %1701 = vmatprep.subr.bf16.mxu0 %v1236
    %1702 = vmatpush1.bf16.msra.mxu0 %v1235
    %1703 = vmatprep.subr.bf16.mxu0 0
    %1704 = vmatpush1.bf16.msra.mxu0 0
    %1705 = vmatprep.subr.bf16.mxu0 0
    %1706 = vmatpush1.bf16.msra.mxu0 0
    %1707 = vmatprep.subr.bf16.mxu0 0
    %1708 = vmatpush1.bf16.msra.mxu0 0
    %1709 = vmatprep.subr.bf16.mxu0 0
    %1710 = vmatpush1.bf16.msra.mxu0 0
    %1711 = vmatprep.subr.bf16.mxu0 0
    %1712 = vmatpush1.bf16.msra.mxu0 0
    %1713 = vmatprep.subr.bf16.mxu0 0
    %1714 = vmatpush1.bf16.msra.mxu0 0
    %1715 = vmatprep.subr.bf16.mxu0 0
    %1716 = vmatpush1.bf16.msra.mxu0 0
    %1717 = vmatprep.subr.bf16.mxu0 0
    %1718 = vmatpush1.bf16.msra.mxu0 0
    %1719 = vmatprep.subr.bf16.mxu0 0
    %1720 = vmatpush1.bf16.msra.mxu0 0
    %1721 = vmatprep.subr.bf16.mxu0 0
    %1722 = vmatpush1.bf16.msra.mxu0 0
    %1723 = vmatprep.subr.bf16.mxu0 0
    %1724 = vmatpush1.bf16.msra.mxu0 0
    %1725 = vmatprep.subr.bf16.mxu0 0
    %1726 = vmatpush1.bf16.msra.mxu0 0
    %1727 = vmatprep.mubr.bf16.mxu0 0
    %1728 = vmatmul.mubr.bf16.gmra.mrb[0].mxu0 %v1693
    %v1729 = vpop.f32.mrb[0].mxu0
    %v1730 = vadd.f32 %v1201, %v1729
    %v1731 = vpop.f32.mrb[0].mxu0
    %v1732 = vadd.f32 %v1202, %v1731
    %v1733 = vpop.f32.mrb[0].mxu0
    %v1734 = vpop.f32.mrb[0].mxu0
    %1735 = vdwg.mxu0
    %v1736 = vxor.u32 %v1730, 2147483648
    %v1737 = vxor.u32 %v1732, 2147483648
    %v1738 = vmul.f32 %v1736, 1.442695
    %v1739 = vpow.pop %v1738
    %v1740 = vmul.f32 %v1737, 1.442695
    %v1741 = vpow.pop %v1740
    %v1742 = vadd.f32 %v1739, 1.0
    %v1743 = vadd.f32 %v1741, 1.0
    %v1744 = vrcp.pop %v1742
    %v1745 = vmul.f32 1.0, %v1744
    %v1746 = vrcp.pop %v1743
    %v1747 = vmul.f32 1.0, %v1746
    %v1748 = vmul.f32 %v1745, 2.0
    %v1749 = vmul.f32 %v1747, 2.0
    %v1750 = vsub.f32 %v1748, 1.0
    %v1751 = vsub.f32 %v1749, 1.0
    %v1752 = vsel %vm134, %v1750, %v1745
    %v1753 = vsel %vm135, %v1751, %v1747
    %v1754 = vmul.f32 %v1752, %v1685
    %v1755 = vmul.f32 %v1752, %v1753
    %1757 = vrot.lane.b32.xlu0 %v1755, 64
    %v1758 = vpop.permute.xlu0 %1757
    %v1760 = vadd.f32 %v1754, %v1758
    %v1761 = vtanh.pop %v1760
    %v1762 = vmul.f32 %v1753, %v1761
    %v1763 = vpack.c.bf16 %v1762, %v1762
    %1765 = vrot.lane.b32.xlu0 %v1763, 64
    %v1766 = vpop.permute.xlu0 %1765
    %v1768 = vsel %vm347, %v1766, 0
    %1770 = vmatprep.subr.bf16.mxu0 %v1230
    %1771 = vmatpush1.bf16.msra.mxu0 %v1229
    %1772 = vmatprep.subr.bf16.mxu0 %v1232
    %1773 = vmatpush1.bf16.msra.mxu0 %v1231
    %1774 = vmatprep.subr.bf16.mxu0 %v1234
    %1775 = vmatpush1.bf16.msra.mxu0 %v1233
    %1776 = vmatprep.subr.bf16.mxu0 %v1236
    %1777 = vmatpush1.bf16.msra.mxu0 %v1235
    %1778 = vmatprep.subr.bf16.mxu0 0
    %1779 = vmatpush1.bf16.msra.mxu0 0
    %1780 = vmatprep.subr.bf16.mxu0 0
    %1781 = vmatpush1.bf16.msra.mxu0 0
    %1782 = vmatprep.subr.bf16.mxu0 0
    %1783 = vmatpush1.bf16.msra.mxu0 0
    %1784 = vmatprep.subr.bf16.mxu0 0
    %1785 = vmatpush1.bf16.msra.mxu0 0
    %1786 = vmatprep.subr.bf16.mxu0 0
    %1787 = vmatpush1.bf16.msra.mxu0 0
    %1788 = vmatprep.subr.bf16.mxu0 0
    %1789 = vmatpush1.bf16.msra.mxu0 0
    %1790 = vmatprep.subr.bf16.mxu0 0
    %1791 = vmatpush1.bf16.msra.mxu0 0
    %1792 = vmatprep.subr.bf16.mxu0 0
    %1793 = vmatpush1.bf16.msra.mxu0 0
    %1794 = vmatprep.subr.bf16.mxu0 0
    %1795 = vmatpush1.bf16.msra.mxu0 0
    %1796 = vmatprep.subr.bf16.mxu0 0
    %1797 = vmatpush1.bf16.msra.mxu0 0
    %1798 = vmatprep.subr.bf16.mxu0 0
    %1799 = vmatpush1.bf16.msra.mxu0 0
    %1800 = vmatprep.subr.bf16.mxu0 0
    %1801 = vmatpush1.bf16.msra.mxu0 0
    %1802 = vmatprep.mubr.bf16.mxu0 0
    %1803 = vmatmul.mubr.bf16.gmra.mrb[0].mxu0 %v1768
    %v1804 = vpop.f32.mrb[0].mxu0
    %v1805 = vadd.f32 %v1203, %v1804
    %v1806 = vpop.f32.mrb[0].mxu0
    %v1807 = vadd.f32 %v1204, %v1806
    %v1808 = vpop.f32.mrb[0].mxu0
    %v1809 = vpop.f32.mrb[0].mxu0
    %1810 = vdwg.mxu0
    %v1811 = vxor.u32 %v1805, 2147483648
    %v1812 = vxor.u32 %v1807, 2147483648
    %v1813 = vmul.f32 %v1811, 1.442695
    %v1814 = vpow.pop %v1813
    %v1815 = vmul.f32 %v1812, 1.442695
    %v1816 = vpow.pop %v1815
    %v1817 = vadd.f32 %v1814, 1.0
    %v1818 = vadd.f32 %v1816, 1.0
    %v1819 = vrcp.pop %v1817
    %v1820 = vmul.f32 1.0, %v1819
    %v1821 = vrcp.pop %v1818
    %v1822 = vmul.f32 1.0, %v1821
    %v1823 = vmul.f32 %v1820, 2.0
    %v1824 = vmul.f32 %v1822, 2.0
    %v1825 = vsub.f32 %v1823, 1.0
    %v1826 = vsub.f32 %v1824, 1.0
    %v1827 = vsel %vm134, %v1825, %v1820
    %v1828 = vsel %vm135, %v1826, %v1822
    %v1829 = vmul.f32 %v1827, %v1760
    %v1830 = vmul.f32 %v1827, %v1828
    %1832 = vrot.lane.b32.xlu0 %v1830, 64
    %v1833 = vpop.permute.xlu0 %1832
    %v1835 = vadd.f32 %v1829, %v1833
    %v1836 = vtanh.pop %v1835
    %v1837 = vmul.f32 %v1828, %v1836
    %1839 = vrot.lane.b32.xlu0 %v1837, 64
    %v1840 = vpop.permute.xlu0 %1839
    %1843 = vrot.lane.b32.xlu0 %v1312, 64
    %v1844 = vpop.permute.xlu0 %1843
    %v1846 = vsel %vm136, %v1840, %v1844
    %v1847 = vpack.c.bf16 %v1846, %v1846
    %v1848 = vld [vmem:[%s7] sm:$0xf]
    %v1849 = vld [vmem:[%s7 + $0x4] sm:$0xf]
    %v1850 = vld [vmem:[%s7 + $0x8] sm:$0xf]
    %v1851 = vld [vmem:[%s7 + $0xc] sm:$0xf]
    %v1852 = vld [vmem:[%s7 + $0x10] sm:$0xf]
    %v1853 = vld [vmem:[%s7 + $0x14] sm:$0xf]
    %v1854 = vld [vmem:[%s7 + $0x18] sm:$0xf]
    %v1855 = vld [vmem:[%s7 + $0x1c] sm:$0xf]
    %v1856 = vld [vmem:[%s8] sm:$0x1]
    %v1858 = vlaneseq
    %v1859 = vshrl.u32 %v1858, 7
    %v1860 = vsub.s32 0, %v1859
    %v1861 = vrot.slane %v1856, %v1860
    %v1871 = vunpack.c.l.b16 %v1848
    %v1872 = vunpack.c.l.b16 %v1849
    %v1873 = vunpack.c.l.b16 %v1850
    %v1874 = vunpack.c.l.b16 %v1851
    %v1875 = vunpack.c.l.b16 %v1852
    %v1876 = vunpack.c.l.b16 %v1853
    %v1877 = vunpack.c.l.b16 %v1854
    %v1878 = vunpack.c.l.b16 %v1855
    %v1879 = vpack.c.b16 %v1872, %v1871
    %v1880 = vpack.c.b16 %v1874, %v1873
    %v1881 = vpack.c.b16 %v1876, %v1875
    %v1882 = vpack.c.b16 %v1878, %v1877
    %v1888 = vsel %vm347, %v1847, 0
    %1890 = vmatprep.subr.bf16.mxu0 0
    %1891 = vmatpush1.bf16.msra.mxu0 %v1879
    %1892 = vmatprep.subr.bf16.mxu0 0
    %1893 = vmatpush1.bf16.msra.mxu0 %v1880
    %1894 = vmatprep.subr.bf16.mxu0 0
    %1895 = vmatpush1.bf16.msra.mxu0 %v1881
    %1896 = vmatprep.subr.bf16.mxu0 0
    %1897 = vmatpush1.bf16.msra.mxu0 %v1882
    %1898 = vmatprep.subr.bf16.mxu0 0
    %1899 = vmatpush1.bf16.msra.mxu0 0
    %1900 = vmatprep.subr.bf16.mxu0 0
    %1901 = vmatpush1.bf16.msra.mxu0 0
    %1902 = vmatprep.subr.bf16.mxu0 0
    %1903 = vmatpush1.bf16.msra.mxu0 0
    %1904 = vmatprep.subr.bf16.mxu0 0
    %1905 = vmatpush1.bf16.msra.mxu0 0
    %1906 = vmatprep.subr.bf16.mxu0 0
    %1907 = vmatpush1.bf16.msra.mxu0 0
    %1908 = vmatprep.subr.bf16.mxu0 0
    %1909 = vmatpush1.bf16.msra.mxu0 0
    %1910 = vmatprep.subr.bf16.mxu0 0
    %1911 = vmatpush1.bf16.msra.mxu0 0
    %1912 = vmatprep.subr.bf16.mxu0 0
    %1913 = vmatpush1.bf16.msra.mxu0 0
    %1914 = vmatprep.subr.bf16.mxu0 0
    %1915 = vmatpush1.bf16.msra.mxu0 0
    %1916 = vmatprep.subr.bf16.mxu0 0
    %1917 = vmatpush1.bf16.msra.mxu0 0
    %1918 = vmatprep.subr.bf16.mxu0 0
    %1919 = vmatpush1.bf16.msra.mxu0 0
    %1920 = vmatprep.subr.bf16.mxu0 0
    %1921 = vmatpush1.bf16.msra.mxu0 0
    %1922 = vmatprep.mubr.bf16.mxu0 0
    %1923 = vmatmul.mubr.bf16.gmra.mrb[0].mxu0 %v1888
    %v1924 = vpop.f32.mrb[0].mxu0
    %v1925 = vadd.f32 %v1861, %v1924
    %v1926 = vpop.f32.mrb[0].mxu0
    %v1927 = vpop.f32.mrb[0].mxu0
    %v1928 = vpop.f32.mrb[0].mxu0
    %1929 = vdwg.mxu0
    %vm1930 = vcmask 31744
    %1931 = vst.msk [vmem:[%s9] sm:$0xff] %vm1930, %v1925
    // Predicated region
    $region58: #{tpu_custom_call.1} parent=1 // pred_check
      _
    $region59: #{tpu_custom_call.1} parent=1 // pred_check_branch
      %1933 = sbr.rel (0) target = $region61
    $region60: #{tpu_custom_call.1} parent=1 // pred_region
      _
    $region61: #{tpu_custom_call.1} parent=1 // pred_fallthru
      _
    // Predicated region
    $region62: #{tpu_custom_call.1} parent=1 // pred_check
      _
    $region63: #{tpu_custom_call.1} parent=1 // pred_check_branch
      %1935 = sbr.rel (0) target = $region65
    $region64: #{tpu_custom_call.1} parent=1 // pred_region
      _
    $region65: #{tpu_custom_call.1} parent=1 // pred_fallthru
      _
    %1936 = vsyncpa [#allocation5], 1
    %1937 = vsyncpa [#allocation7], 1
    %1938 = vsyncpa [#allocation10], 1

</llo_original>
